<compile_context>
chip_gen: v5e
topology: v5e:2x2
jax: 0.10.0
libtpu: 0.0.40
codegen_flags: <defaults>
</compile_context>

<pallas_src>
import functools

import jax
import jax.numpy as jnp
from jax import lax
from jax.experimental import pallas as pl
from jax.experimental.pallas import tpu as pltpu


def _round_up(a, b):
    return (a + b - 1) // b * b


def _gcn_kernel(compute_dtype,
                edge_ref, xd_ref, d_ref, lin_w_ref, lin_b_ref,
                out_ref, acc_ref, iota_ref):
    nb = pl.program_id(0)                    # node block (parallel axis)
    t = pl.program_id(1)                     # edge tile (reduction axis)
    N_p = xd_ref.shape[0]                    # padded node count
    TN = acc_ref.shape[0]                    # node rows owned by this block

    # ---- init on first edge tile: node iota + zero accumulator ------------
    @pl.when(t == 0)
    def _init():
        iota_ref[...] = lax.broadcasted_iota(jnp.int32, (1, N_p), 1)
        acc_ref[...] = jnp.zeros_like(acc_ref)

    # ---- unpack the per-edge stream ----------------------------------------
    edges = edge_ref[...]                                     # [TE, 3] int32
    row = edges[:, 0:1]                                       # [TE, 1]
    col = edges[:, 1:2]                                       # [TE, 1]
    ew = pltpu.bitcast(edges[:, 2:3], jnp.float32)            # [TE, 1] f32

    # ---- one-hot gather / scatter on the MXU -------------------------------
    iota_n = iota_ref[...]                                    # [1, N_p]
    R = (row == iota_n).astype(compute_dtype)                 # sources [TE, N_p]
    col_local = col - nb * TN
    C = (col_local == iota_n[:, :TN]).astype(compute_dtype)   # targets [TE, TN]

    gathered = jnp.dot(R, xd_ref[...],                        # (d*x)[row] [TE,F]
                       preferred_element_type=jnp.float32)
    msgs = (gathered * ew).astype(compute_dtype)              # scale by edge weight
    # TODO(synk): on v7x, confirm this += lowers to MRB in-place accumulation;
    # otherwise restage by combining two edge tiles before flushing to acc.
    acc_ref[...] += lax.dot_general(                           # scatter-add at col
        C, msgs, (((0,), (0,)), ((), ())),
        preferred_element_type=jnp.float32)

    # ---- finalize on last tile: d[col] scaling + linear + store ------------
    @pl.when(t == pl.num_programs(1) - 1)
    def _finalize():
        agg = acc_ref[...] * d_ref[...]
        y = lax.dot_general(agg, lin_w_ref[...], (((1,), (1,)), ((), ())),
                            preferred_element_type=jnp.float32) + lin_b_ref[...]
        out_ref[...] = y.astype(out_ref.dtype)


def confidence_gcn_conv(x, edge_index, edge_attr, params, adj_recon=None, *,
                        edge_tile=1024, node_blocks=None, compute_dtype=None):
    N, F_in = x.shape
    E = edge_index.shape[1]
    F_out = params["lin_w"].shape[0]

    # ----- generation-aware defaults ----------------------------------------
    try:
        kind = jax.devices()[0].device_kind.lower()
    except Exception:  # pragma: no cover
        kind = ""
    if compute_dtype is None:
        # bf16 one-hots are exact; 2x MXU rate on v6e/v7x. v5e VPU has no
        # native bf16, so keep its elementwise path in f32.
        compute_dtype = jnp.bfloat16 if ("v6" in kind or "v7" in kind) else jnp.float32
    if node_blocks is None:
        node_blocks = 2 if "v7" in kind else 1      # v7x: 2 TensorCores / chip

    N_p = _round_up(N, 128)            # lane-dense one-hot / contraction axis
    F_in_p = _round_up(F_in, 128)      # lane-dense feature axes
    F_out_p = _round_up(F_out, 128)

    node_blocks = max(1, int(node_blocks))
    if N_p % node_blocks or (N_p // node_blocks) % 8:
        node_blocks = 1
    TN = N_p // node_blocks

    TE = min(int(edge_tile), _round_up(E, 8))
    E_p = _round_up(E, TE)
    num_tiles = E_p // TE

    row = edge_index[0].astype(jnp.int32)
    col = edge_index[1].astype(jnp.int32)

    # ----- O(E)/O(N) prep that needs global passes: plain XLA ---------------
    deg = jnp.zeros((N,), jnp.float32).at[row].add(1.0)
    d = jnp.where(deg > 0, lax.rsqrt(deg), 0.0)               # inf/nan guarded

    conf_w = params["conf_w"].astype(jnp.float32).reshape(-1, 1)
    conf_b = params["conf_b"].astype(jnp.float32).reshape(1, 1)
    ew = jax.nn.sigmoid(edge_attr.astype(jnp.float32) @ conf_w + conf_b)[:, 0]
    if adj_recon is not None:
        # O(E) gather instead of an O(E*N^2) in-kernel matmul; adj_recon
        # itself never enters VMEM.
        ew = (ew + adj_recon[row, col].astype(jnp.float32)) * 0.5
    ew = jnp.where(jnp.isnan(ew), 0.0, ew)        # matches reference norm NaN-zeroing

    # Packed per-edge stream: [row, col, bits(ew)].  Padded edges use node
    # index N: if N < N_p they hit the zero rows of xd, if N == N_p the
    # one-hot row is all zeros — either way they contribute nothing.
    row_p = jnp.full((E_p,), N, jnp.int32).at[:E].set(row)
    col_p = jnp.full((E_p,), N, jnp.int32).at[:E].set(col)
    ewb_p = jnp.zeros((E_p,), jnp.int32).at[:E].set(
        lax.bitcast_convert_type(ew, jnp.int32))
    edges = jnp.stack([row_p, col_p, ewb_p], axis=1)          # [E_p, 3] int32

    # xd = deg^-1/2 * x precomputed here (saves a VMEM scratch + VPU pass).
    xd = x.astype(jnp.float32) * d[:, None]
    xd_p = jnp.zeros((N_p, F_in_p), compute_dtype).at[:N, :F_in].set(
        xd.astype(compute_dtype))
    d_p = jnp.zeros((N_p, 1), jnp.float32).at[:N, 0].set(d)
    lw_p = jnp.zeros((F_out_p, F_in_p), jnp.float32).at[:F_out, :F_in].set(
        params["lin_w"].astype(jnp.float32))
    lb_p = jnp.zeros((1, F_out_p), jnp.float32).at[0, :F_out].set(
        params["lin_b"].astype(jnp.float32))

    # ----- VMEM budget (actual blocks, ~1.5x margin, headroom vs physical) --
    csz = jnp.dtype(compute_dtype).itemsize
    resident_b = (N_p * F_in_p * csz              # xd
                  + F_out_p * F_in_p * 4          # lin_w
                  + 8 * F_out_p * 4               # lin_b (sublane padded)
                  + TN * 128 * 4                  # d block (lane padded)
                  + TN * F_out_p * 4)             # out block
    stream_b = 2 * TE * 128 * 4                   # packed edges, 2 bufs, lane pad
    scratch_b = TN * F_in_p * 4 + 8 * N_p * 4     # accumulator + iota
    interm_b = (TE * N_p * csz + TE * TN * csz    # R, C one-hots
                + TE * F_in_p * (4 + csz))        # gathered + msgs
    budget = resident_b + stream_b + scratch_b + interm_b
    try:
        phys = int(pltpu.get_tpu_info().vmem_capacity_bytes)
    except Exception:  # pragma: no cover
        phys = 64 << 20                           # conservative (v7x-sized)
    vmem_limit = int(min(max(int(1.5 * budget) + (4 << 20), 32 << 20),
                         int(0.78 * phys)))

    def _call(single_buffer_residents):
        if single_buffer_residents:
            # Constant-index blocks never change -> no second pipeline buffer.
            resident = lambda shape: pl.BlockSpec(
                shape, lambda nb, t: (0, 0), pipeline_mode=pl.Buffered(1))
        else:
            resident = lambda shape: pl.BlockSpec(shape, lambda nb, t: (0, 0))
        return pl.pallas_call(
            functools.partial(_gcn_kernel, compute_dtype),
            out_shape=jax.ShapeDtypeStruct((N_p, F_out_p), x.dtype),
            grid=(node_blocks, num_tiles),
            in_specs=[
                pl.BlockSpec((TE, 3), lambda nb, t: (t, 0)),       # packed edges
                resident((N_p, F_in_p)),                           # xd (d * x)
                pl.BlockSpec((TN, 1), lambda nb, t: (nb, 0)),      # d, node slice
                resident((F_out_p, F_in_p)),                       # lin_w
                resident((1, F_out_p)),                            # lin_b
            ],
            out_specs=pl.BlockSpec((TN, F_out_p), lambda nb, t: (nb, 0)),
            scratch_shapes=[pltpu.VMEM((TN, F_in_p), jnp.float32),  # accumulator
                            pltpu.VMEM((1, N_p), jnp.int32)],       # node iota
            compiler_params=pltpu.CompilerParams(
                dimension_semantics=("parallel", "arbitrary"),
                vmem_limit_bytes=vmem_limit),
        )(edges, xd_p, d_p, lw_p, lb_p)

    try:
        out = _call(True)
    except Exception:
        # Older Pallas without pipeline_mode / Buffered(1): double-buffered residents.
        out = _call(False)
    return out[:N, :F_out]


def ref_forward(x, edge_index, edge_attr, params, adj_recon=None):
    """Pure-JAX reference replicating the PyTorch forward exactly."""
    row, col = edge_index
    ew = jax.nn.sigmoid(edge_attr @ params["conf_w"].T + params["conf_b"]).squeeze()
    if adj_recon is not None:
        ew = (ew + adj_recon[row, col]) / 2.0
    N = x.shape[0]
    deg = jnp.zeros((N,), x.dtype).at[row].add(1.0)
    dis = deg ** -0.5
    dis = jnp.where(jnp.isinf(dis) | jnp.isnan(dis), 0.0, dis)
    norm = dis[row] * dis[col] * ew
    norm = jnp.where(jnp.isnan(norm), 0.0, norm)
    out = jnp.zeros_like(x).at[col].add(x[row] * norm[:, None])
    return out @ params["lin_w"].T + params["lin_b"]


if __name__ == "__main__":
    key = jax.random.PRNGKey(0)
    N, F_in, F_out, E, edge_dim = 16, 8, 16, 32, 3

    k_x, k_ei, k_ea, k_adj, k_lw, k_cw = jax.random.split(key, 6)
    x = jax.random.normal(k_x, (N, F_in), jnp.float32)
    edge_index = jax.random.randint(k_ei, (2, E), 0, N, jnp.int32)
    edge_attr = jax.random.normal(k_ea, (E, edge_dim), jnp.float32)
    adj_recon = jax.nn.sigmoid(jax.random.normal(k_adj, (N, N), jnp.float32))

    # deterministic xavier_uniform init (zero biases), like reset_parameters()
    lin_bound = (6.0 / (F_in + F_out)) ** 0.5
    conf_bound = (6.0 / (edge_dim + 1)) ** 0.5
    params = {
        "lin_w": jax.random.uniform(k_lw, (F_out, F_in), jnp.float32,
                                    -lin_bound, lin_bound),
        "lin_b": jnp.zeros((F_out,), jnp.float32),
        "conf_w": jax.random.uniform(k_cw, (1, edge_dim), jnp.float32,
                                     -conf_bound, conf_bound),
        "conf_b": jnp.zeros((1,), jnp.float32),
    }

    ref_none = ref_forward(x, edge_index, edge_attr, params)
    ref_rec = ref_forward(x, edge_index, edge_attr, params, adj_recon)

    # adj_recon=None path, multi-edge-tile, f32 (exercises init/accum/finalize)
    out_none = jax.block_until_ready(
        confidence_gcn_conv(x, edge_index, edge_attr, params,
                            edge_tile=8, node_blocks=1,
                            compute_dtype=jnp.float32))
    assert out_none.shape == (N, F_out)
    assert jnp.allclose(out_none, ref_none, rtol=1e-4, atol=1e-4)

    # adj_recon path with 2 node blocks (exercises the parallel node axis)
    out_rec = jax.block_until_ready(
        confidence_gcn_conv(x, edge_index, edge_attr, params, adj_recon,
                            edge_tile=16, node_blocks=2,
                            compute_dtype=jnp.float32))
    assert jnp.allclose(out_rec, ref_rec, rtol=1e-4, atol=1e-4)

    # generation-default path (bf16 one-hots/messages on v6e/v7x, f32 on v5e)
    out_auto = jax.block_until_ready(
        confidence_gcn_conv(x, edge_index, edge_attr, params))
    assert jnp.allclose(out_auto, ref_none, rtol=3e-2, atol=3e-2)

    print("KERNEL_OK")
</pallas_src>

<mosaic_0001>
module attributes {stable_mosaic.version = 11 : i64} {
  func.func @_gcn_kernel(%arg0: i32, %arg1: i32, %arg2: memref<8x3xi32, #tpu.memory_space<vmem>>, %arg3: memref<128x128xf32, #tpu.memory_space<vmem>>, %arg4: memref<128x1xf32, #tpu.memory_space<vmem>>, %arg5: memref<128x128xf32, #tpu.memory_space<vmem>>, %arg6: memref<1x128xf32, #tpu.memory_space<vmem>>, %arg7: memref<128x128xf32, #tpu.memory_space<vmem>>, %arg8: memref<128x128xf32, #tpu.memory_space<vmem>>, %arg9: memref<1x128xi32, #tpu.memory_space<vmem>>) attributes {dimension_semantics = [#tpu.dimension_semantics<parallel>, #tpu.dimension_semantics<arbitrary>], iteration_bounds = array<i64: 1, 4>, scalar_prefetch = 0 : i64, scratch_operands = 2 : i64, tpu.core_type = #tpu.core_type<tc>, window_params = [{transform_indices = @transform_0, window_bounds = array<i64: 8, 3>}, {pipeline_mode = #tpu.pipeline_mode<synchronous>, transform_indices = @transform_1, window_bounds = array<i64: 128, 128>}, {transform_indices = @transform_2, window_bounds = array<i64: 128, 1>}, {pipeline_mode = #tpu.pipeline_mode<synchronous>, transform_indices = @transform_3, window_bounds = array<i64: 128, 128>}, {pipeline_mode = #tpu.pipeline_mode<synchronous>, transform_indices = @transform_4, window_bounds = array<i64: 1, 128>}, {transform_indices = @transform_5, window_bounds = array<i64: 128, 128>}]} {
    %c0_i32 = arith.constant 0 : i32
    %0 = arith.cmpi eq, %arg1, %c0_i32 : i32
    %1 = arith.extui %0 : i1 to i32
    %c0_i32_0 = arith.constant 0 : i32
    %2 = arith.cmpi ne, %1, %c0_i32_0 : i32
    scf.if %2 {
      %33 = tpu.iota {dimensions = array<i32: 1>} : vector<1x128xi32>
      %c0_12 = arith.constant 0 : index
      %c0_13 = arith.constant 0 : index
      %34 = vector.load %arg9[%c0_12, %c0_13] : memref<1x128xi32, #tpu.memory_space<vmem>>, vector<1x128xi32>
      tpu.vector_store %arg9[%c0_12, %c0_13], %33 {strides = array<i32>} : memref<1x128xi32, #tpu.memory_space<vmem>>, vector<1x128xi32>,
      %cst_14 = arith.constant 0.000000e+00 : f32
      %35 = vector.broadcast %cst_14 : f32 to vector<128x128xf32>
      %c0_15 = arith.constant 0 : index
      %c0_16 = arith.constant 0 : index
      %36 = vector.load %arg8[%c0_15, %c0_16] : memref<128x128xf32, #tpu.memory_space<vmem>>, vector<128x128xf32>
      tpu.vector_store %arg8[%c0_15, %c0_16], %35 {strides = array<i32>} : memref<128x128xf32, #tpu.memory_space<vmem>>, vector<128x128xf32>,
    } else {
    }
    %c0 = arith.constant 0 : index
    %c0_1 = arith.constant 0 : index
    %3 = vector.load %arg2[%c0, %c0_1] : memref<8x3xi32, #tpu.memory_space<vmem>>, vector<8x3xi32>
    %4 = vector.extract_strided_slice %3 {offsets = [0, 0], sizes = [8, 1], strides = [1, 1]} : vector<8x3xi32> to vector<8x1xi32>
    %5 = vector.extract_strided_slice %3 {offsets = [0, 1], sizes = [8, 1], strides = [1, 1]} : vector<8x3xi32> to vector<8x1xi32>
    %6 = vector.extract_strided_slice %3 {offsets = [0, 2], sizes = [8, 1], strides = [1, 1]} : vector<8x3xi32> to vector<8x1xi32>
    %7 = tpu.bitcast %6 : vector<8x1xi32> -> vector<8x1xf32>
    %c0_2 = arith.constant 0 : index
    %c0_3 = arith.constant 0 : index
    %8 = vector.load %arg9[%c0_2, %c0_3] : memref<1x128xi32, #tpu.memory_space<vmem>>, vector<1x128xi32>
    %9 = vector.broadcast %4 : vector<8x1xi32> to vector<8x128xi32>
    %10 = vector.broadcast %8 : vector<1x128xi32> to vector<8x128xi32>
    %11 = arith.cmpi eq, %9, %10 : vector<8x128xi32>
    %12 = arith.extui %11 : vector<8x128xi1> to vector<8x128xi32>
    %13 = arith.sitofp %12 : vector<8x128xi32> to vector<8x128xf32>
    %c128_i32 = arith.constant 128 : i32
    %14 = arith.muli %arg0, %c128_i32 : i32
    %15 = vector.broadcast %14 : i32 to vector<8x1xi32>
    %16 = arith.subi %5, %15 : vector<8x1xi32>
    %17 = vector.broadcast %16 : vector<8x1xi32> to vector<8x128xi32>
    %18 = vector.broadcast %8 : vector<1x128xi32> to vector<8x128xi32>
    %19 = arith.cmpi eq, %17, %18 : vector<8x128xi32>
    %20 = arith.extui %19 : vector<8x128xi1> to vector<8x128xi32>
    %21 = arith.sitofp %20 : vector<8x128xi32> to vector<8x128xf32>
    %c0_4 = arith.constant 0 : index
    %c0_5 = arith.constant 0 : index
    %22 = vector.load %arg3[%c0_4, %c0_5] : memref<128x128xf32, #tpu.memory_space<vmem>>, vector<128x128xf32>
    %cst = arith.constant dense<0.000000e+00> : vector<8x128xf32>
    %23 = tpu.matmul %13, %22, %cst {dimension_numbers = #tpu.dot_dimension_numbers<[1], [0], [0], [1], [0, 0, 1, 1], [], []>} : vector<8x128xf32>, vector<128x128xf32>, vector<8x128xf32> -> vector<8x128xf32>
    %24 = vector.broadcast %7 : vector<8x1xf32> to vector<8x128xf32>
    %25 = arith.mulf %23, %24 : vector<8x128xf32>
    %c0_6 = arith.constant 0 : index
    %c0_7 = arith.constant 0 : index
    %26 = vector.load %arg8[%c0_6, %c0_7] : memref<128x128xf32, #tpu.memory_space<vmem>>, vector<128x128xf32>
    %cst_8 = arith.constant dense<0.000000e+00> : vector<128x128xf32>
    %27 = tpu.matmul %21, %25, %cst_8 {dimension_numbers = #tpu.dot_dimension_numbers<[0], [0], [1], [1], [0, 1, 1, 1], [], []>} : vector<8x128xf32>, vector<8x128xf32>, vector<128x128xf32> -> vector<128x128xf32>
    %28 = arith.addf %26, %27 : vector<128x128xf32>
    %c0_9 = arith.constant 0 : index
    %c0_10 = arith.constant 0 : index
    %29 = vector.load %arg8[%c0_9, %c0_10] : memref<128x128xf32, #tpu.memory_space<vmem>>, vector<128x128xf32>
    tpu.vector_store %arg8[%c0_9, %c0_10], %28 {strides = array<i32>} : memref<128x128xf32, #tpu.memory_space<vmem>>, vector<128x128xf32>,
    %c3_i32 = arith.constant 3 : i32
    %30 = arith.cmpi eq, %arg1, %c3_i32 : i32
    %31 = arith.extui %30 : i1 to i32
    %c0_i32_11 = arith.constant 0 : i32
    %32 = arith.cmpi ne, %31, %c0_i32_11 : i32
    scf.if %32 {
      %c0_12 = arith.constant 0 : index
      %c0_13 = arith.constant 0 : index
      %33 = vector.load %arg8[%c0_12, %c0_13] : memref<128x128xf32, #tpu.memory_space<vmem>>, vector<128x128xf32>
      %c0_14 = arith.constant 0 : index
      %c0_15 = arith.constant 0 : index
      %34 = vector.load %arg4[%c0_14, %c0_15] : memref<128x1xf32, #tpu.memory_space<vmem>>, vector<128x1xf32>
      %35 = vector.broadcast %34 : vector<128x1xf32> to vector<128x128xf32>
      %36 = arith.mulf %33, %35 : vector<128x128xf32>
      %c0_16 = arith.constant 0 : index
      %c0_17 = arith.constant 0 : index
      %37 = vector.load %arg5[%c0_16, %c0_17] : memref<128x128xf32, #tpu.memory_space<vmem>>, vector<128x128xf32>
      %cst_18 = arith.constant dense<0.000000e+00> : vector<128x128xf32>
      %38 = tpu.matmul %36, %37, %cst_18 {dimension_numbers = #tpu.dot_dimension_numbers<[1], [1], [0], [0], [0, 0, 1, 0], [], []>} : vector<128x128xf32>, vector<128x128xf32>, vector<128x128xf32> -> vector<128x128xf32>
      %c0_19 = arith.constant 0 : index
      %c0_20 = arith.constant 0 : index
      %39 = vector.load %arg6[%c0_19, %c0_20] : memref<1x128xf32, #tpu.memory_space<vmem>>, vector<1x128xf32>
      %40 = vector.broadcast %39 : vector<1x128xf32> to vector<128x128xf32>
      %41 = arith.addf %38, %40 : vector<128x128xf32>
      %c0_21 = arith.constant 0 : index
      %c0_22 = arith.constant 0 : index
      %42 = vector.load %arg7[%c0_21, %c0_22] : memref<128x128xf32, #tpu.memory_space<vmem>>, vector<128x128xf32>
      tpu.vector_store %arg7[%c0_21, %c0_22], %41 {strides = array<i32>} : memref<128x128xf32, #tpu.memory_space<vmem>>, vector<128x128xf32>,
    } else {
    }
    return
  }
  func.func @transform_0(%arg0: i32, %arg1: i32) -> (i32, i32) {
    %c0_i32 = arith.constant 0 : i32
    %c0_i32_0 = arith.constant 0 : i32
    return %arg1, %c0_i32 : i32, i32
  }
  func.func @transform_1(%arg0: i32, %arg1: i32) -> (i32, i32) {
    %c0_i32 = arith.constant 0 : i32
    %c0_i32_0 = arith.constant 0 : i32
    %c0_i32_1 = arith.constant 0 : i32
    return %c0_i32, %c0_i32_0 : i32, i32
  }
  func.func @transform_2(%arg0: i32, %arg1: i32) -> (i32, i32) {
    %c0_i32 = arith.constant 0 : i32
    %c0_i32_0 = arith.constant 0 : i32
    return %arg0, %c0_i32 : i32, i32
  }
  func.func @transform_3(%arg0: i32, %arg1: i32) -> (i32, i32) {
    %c0_i32 = arith.constant 0 : i32
    %c0_i32_0 = arith.constant 0 : i32
    %c0_i32_1 = arith.constant 0 : i32
    return %c0_i32, %c0_i32_0 : i32, i32
  }
  func.func @transform_4(%arg0: i32, %arg1: i32) -> (i32, i32) {
    %c0_i32 = arith.constant 0 : i32
    %c0_i32_0 = arith.constant 0 : i32
    %c0_i32_1 = arith.constant 0 : i32
    return %c0_i32, %c0_i32_0 : i32, i32
  }
  func.func @transform_5(%arg0: i32, %arg1: i32) -> (i32, i32) {
    %c0_i32 = arith.constant 0 : i32
    %c0_i32_0 = arith.constant 0 : i32
    return %arg0, %c0_i32 : i32, i32
  }
}

module attributes {stable_mosaic.version = 11 : i64} {
  func.func @_gcn_kernel(%arg0: i32, %arg1: i32, %arg2: memref<8x3xi32, #tpu.memory_space<vmem>>, %arg3: memref<128x128xf32, #tpu.memory_space<vmem>>, %arg4: memref<128x1xf32, #tpu.memory_space<vmem>>, %arg5: memref<128x128xf32, #tpu.memory_space<vmem>>, %arg6: memref<1x128xf32, #tpu.memory_space<vmem>>, %arg7: memref<128x128xf32, #tpu.memory_space<vmem>>, %arg8: memref<128x128xf32, #tpu.memory_space<vmem>>, %arg9: memref<1x128xi32, #tpu.memory_space<vmem>>) attributes {dimension_semantics = [#tpu.dimension_semantics<parallel>, #tpu.dimension_semantics<arbitrary>], iteration_bounds = array<i64: 1, 4>, scalar_prefetch = 0 : i64, scratch_operands = 2 : i64, tpu.core_type = #tpu.core_type<tc>, window_params = [{transform_indices = @transform_0, window_bounds = array<i64: 8, 3>}, {pipeline_mode = #tpu.pipeline_mode<synchronous>, transform_indices = @transform_1, window_bounds = array<i64: 128, 128>}, {transform_indices = @transform_2, window_bounds = array<i64: 128, 1>}, {pipeline_mode = #tpu.pipeline_mode<synchronous>, transform_indices = @transform_3, window_bounds = array<i64: 128, 128>}, {pipeline_mode = #tpu.pipeline_mode<synchronous>, transform_indices = @transform_4, window_bounds = array<i64: 1, 128>}, {transform_indices = @transform_5, window_bounds = array<i64: 128, 128>}]} {
    %c0_i32 = arith.constant 0 : i32
    %0 = arith.cmpi eq, %arg1, %c0_i32 : i32
    %1 = arith.extui %0 : i1 to i32
    %c0_i32_0 = arith.constant 0 : i32
    %2 = arith.cmpi ne, %1, %c0_i32_0 : i32
    scf.if %2 {
      %33 = tpu.iota {dimensions = array<i32: 1>} : vector<1x128xi32>
      %c0_12 = arith.constant 0 : index
      %c0_13 = arith.constant 0 : index
      %34 = vector.load %arg9[%c0_12, %c0_13] : memref<1x128xi32, #tpu.memory_space<vmem>>, vector<1x128xi32>
      tpu.vector_store %arg9[%c0_12, %c0_13], %33 {strides = array<i32>} : memref<1x128xi32, #tpu.memory_space<vmem>>, vector<1x128xi32>,
      %cst_14 = arith.constant 0.000000e+00 : f32
      %35 = vector.broadcast %cst_14 : f32 to vector<128x128xf32>
      %c0_15 = arith.constant 0 : index
      %c0_16 = arith.constant 0 : index
      %36 = vector.load %arg8[%c0_15, %c0_16] : memref<128x128xf32, #tpu.memory_space<vmem>>, vector<128x128xf32>
      tpu.vector_store %arg8[%c0_15, %c0_16], %35 {strides = array<i32>} : memref<128x128xf32, #tpu.memory_space<vmem>>, vector<128x128xf32>,
    } else {
    }
    %c0 = arith.constant 0 : index
    %c0_1 = arith.constant 0 : index
    %3 = vector.load %arg2[%c0, %c0_1] : memref<8x3xi32, #tpu.memory_space<vmem>>, vector<8x3xi32>
    %4 = vector.extract_strided_slice %3 {offsets = [0, 0], sizes = [8, 1], strides = [1, 1]} : vector<8x3xi32> to vector<8x1xi32>
    %5 = vector.extract_strided_slice %3 {offsets = [0, 1], sizes = [8, 1], strides = [1, 1]} : vector<8x3xi32> to vector<8x1xi32>
    %6 = vector.extract_strided_slice %3 {offsets = [0, 2], sizes = [8, 1], strides = [1, 1]} : vector<8x3xi32> to vector<8x1xi32>
    %7 = tpu.bitcast %6 : vector<8x1xi32> -> vector<8x1xf32>
    %c0_2 = arith.constant 0 : index
    %c0_3 = arith.constant 0 : index
    %8 = vector.load %arg9[%c0_2, %c0_3] : memref<1x128xi32, #tpu.memory_space<vmem>>, vector<1x128xi32>
    %9 = vector.broadcast %4 : vector<8x1xi32> to vector<8x128xi32>
    %10 = vector.broadcast %8 : vector<1x128xi32> to vector<8x128xi32>
    %11 = arith.cmpi eq, %9, %10 : vector<8x128xi32>
    %12 = arith.extui %11 : vector<8x128xi1> to vector<8x128xi32>
    %13 = arith.sitofp %12 : vector<8x128xi32> to vector<8x128xf32>
    %c128_i32 = arith.constant 128 : i32
    %14 = arith.muli %arg0, %c128_i32 : i32
    %15 = vector.broadcast %14 : i32 to vector<8x1xi32>
    %16 = arith.subi %5, %15 : vector<8x1xi32>
    %17 = vector.broadcast %16 : vector<8x1xi32> to vector<8x128xi32>
    %18 = vector.broadcast %8 : vector<1x128xi32> to vector<8x128xi32>
    %19 = arith.cmpi eq, %17, %18 : vector<8x128xi32>
    %20 = arith.extui %19 : vector<8x128xi1> to vector<8x128xi32>
    %21 = arith.sitofp %20 : vector<8x128xi32> to vector<8x128xf32>
    %c0_4 = arith.constant 0 : index
    %c0_5 = arith.constant 0 : index
    %22 = vector.load %arg3[%c0_4, %c0_5] : memref<128x128xf32, #tpu.memory_space<vmem>>, vector<128x128xf32>
    %cst = arith.constant dense<0.000000e+00> : vector<8x128xf32>
    %23 = tpu.matmul %13, %22, %cst {dimension_numbers = #tpu.dot_dimension_numbers<[1], [0], [0], [1], [0, 0, 1, 1], [], []>} : vector<8x128xf32>, vector<128x128xf32>, vector<8x128xf32> -> vector<8x128xf32>
    %24 = vector.broadcast %7 : vector<8x1xf32> to vector<8x128xf32>
    %25 = arith.mulf %23, %24 : vector<8x128xf32>
    %c0_6 = arith.constant 0 : index
    %c0_7 = arith.constant 0 : index
    %26 = vector.load %arg8[%c0_6, %c0_7] : memref<128x128xf32, #tpu.memory_space<vmem>>, vector<128x128xf32>
    %cst_8 = arith.constant dense<0.000000e+00> : vector<128x128xf32>
    %27 = tpu.matmul %21, %25, %cst_8 {dimension_numbers = #tpu.dot_dimension_numbers<[0], [0], [1], [1], [0, 1, 1, 1], [], []>} : vector<8x128xf32>, vector<8x128xf32>, vector<128x128xf32> -> vector<128x128xf32>
    %28 = arith.addf %26, %27 : vector<128x128xf32>
    %c0_9 = arith.constant 0 : index
    %c0_10 = arith.constant 0 : index
    %29 = vector.load %arg8[%c0_9, %c0_10] : memref<128x128xf32, #tpu.memory_space<vmem>>, vector<128x128xf32>
    tpu.vector_store %arg8[%c0_9, %c0_10], %28 {strides = array<i32>} : memref<128x128xf32, #tpu.memory_space<vmem>>, vector<128x128xf32>,
    %c3_i32 = arith.constant 3 : i32
    %30 = arith.cmpi eq, %arg1, %c3_i32 : i32
    %31 = arith.extui %30 : i1 to i32
    %c0_i32_11 = arith.constant 0 : i32
    %32 = arith.cmpi ne, %31, %c0_i32_11 : i32
    scf.if %32 {
      %c0_12 = arith.constant 0 : index
      %c0_13 = arith.constant 0 : index
      %33 = vector.load %arg8[%c0_12, %c0_13] : memref<128x128xf32, #tpu.memory_space<vmem>>, vector<128x128xf32>
      %c0_14 = arith.constant 0 : index
      %c0_15 = arith.constant 0 : index
      %34 = vector.load %arg4[%c0_14, %c0_15] : memref<128x1xf32, #tpu.memory_space<vmem>>, vector<128x1xf32>
      %35 = vector.broadcast %34 : vector<128x1xf32> to vector<128x128xf32>
      %36 = arith.mulf %33, %35 : vector<128x128xf32>
      %c0_16 = arith.constant 0 : index
      %c0_17 = arith.constant 0 : index
      %37 = vector.load %arg5[%c0_16, %c0_17] : memref<128x128xf32, #tpu.memory_space<vmem>>, vector<128x128xf32>
      %cst_18 = arith.constant dense<0.000000e+00> : vector<128x128xf32>
      %38 = tpu.matmul %36, %37, %cst_18 {dimension_numbers = #tpu.dot_dimension_numbers<[1], [1], [0], [0], [0, 0, 1, 0], [], []>} : vector<128x128xf32>, vector<128x128xf32>, vector<128x128xf32> -> vector<128x128xf32>
      %c0_19 = arith.constant 0 : index
      %c0_20 = arith.constant 0 : index
      %39 = vector.load %arg6[%c0_19, %c0_20] : memref<1x128xf32, #tpu.memory_space<vmem>>, vector<1x128xf32>
      %40 = vector.broadcast %39 : vector<1x128xf32> to vector<128x128xf32>
      %41 = arith.addf %38, %40 : vector<128x128xf32>
      %c0_21 = arith.constant 0 : index
      %c0_22 = arith.constant 0 : index
      %42 = vector.load %arg7[%c0_21, %c0_22] : memref<128x128xf32, #tpu.memory_space<vmem>>, vector<128x128xf32>
      tpu.vector_store %arg7[%c0_21, %c0_22], %41 {strides = array<i32>} : memref<128x128xf32, #tpu.memory_space<vmem>>, vector<128x128xf32>,
    } else {
    }
    return
  }
  func.func @transform_0(%arg0: i32, %arg1: i32) -> (i32, i32) {
    %c0_i32 = arith.constant 0 : i32
    %c0_i32_0 = arith.constant 0 : i32
    return %arg1, %c0_i32 : i32, i32
  }
  func.func @transform_1(%arg0: i32, %arg1: i32) -> (i32, i32) {
    %c0_i32 = arith.constant 0 : i32
    %c0_i32_0 = arith.constant 0 : i32
    %c0_i32_1 = arith.constant 0 : i32
    return %c0_i32, %c0_i32_0 : i32, i32
  }
  func.func @transform_2(%arg0: i32, %arg1: i32) -> (i32, i32) {
    %c0_i32 = arith.constant 0 : i32
    %c0_i32_0 = arith.constant 0 : i32
    return %arg0, %c0_i32 : i32, i32
  }
  func.func @transform_3(%arg0: i32, %arg1: i32) -> (i32, i32) {
    %c0_i32 = arith.constant 0 : i32
    %c0_i32_0 = arith.constant 0 : i32
    %c0_i32_1 = arith.constant 0 : i32
    return %c0_i32, %c0_i32_0 : i32, i32
  }
  func.func @transform_4(%arg0: i32, %arg1: i32) -> (i32, i32) {
    %c0_i32 = arith.constant 0 : i32
    %c0_i32_0 = arith.constant 0 : i32
    %c0_i32_1 = arith.constant 0 : i32
    return %c0_i32, %c0_i32_0 : i32, i32
  }
  func.func @transform_5(%arg0: i32, %arg1: i32) -> (i32, i32) {
    %c0_i32 = arith.constant 0 : i32
    %c0_i32_0 = arith.constant 0 : i32
    return %arg0, %c0_i32 : i32, i32
  }
}

</mosaic_0001>

<llo_original>
// kernel: tpu_custom_call.1
$region0: #{tpu_custom_call.1}
  #allocation0 [shape = 'u32[]', space=smem, size = 0x4, offset = 0x4, fixed_abs, tag = 'smem constant byte address 0x4 - core index']
  #allocation1 [shape = 'u32[72,128]{1,0:T(1,128)}', space=vmem, size = 0x9000, scoped, tag = 'internal scratch']
  #allocation2 [shape = 'f32[128,128]{1,0:T(8,128)}', space=vmem, size = 0x10000, scoped, tag = 'scratch operand']
  #allocation3 [shape = 's32[1,128]{1,0:T(1,128)}', space=vmem, size = 0x200, scoped, tag = 'scratch operand']
  %s0 = inlined_call_operand.vmem [shape: s32[32,3], index: 0, kind: input, shape index: {}]
  %s1 = inlined_call_operand.vmem [shape: f32[128,128], index: 1, kind: input, shape index: {}]
  %s2 = inlined_call_operand.vmem [shape: f32[128,1], index: 2, kind: input, shape index: {}]
  %s3 = inlined_call_operand.hbm [shape: f32[128,128], index: 3, kind: input, shape index: {}]
  %s4 = inlined_call_operand.vmem [shape: f32[1,128], index: 4, kind: input, shape index: {}]
  %s5 = inlined_call_operand.hbm [shape: f32[128,128], index: 5, kind: output, shape index: {}]
  %s6 = sld [smem:[#allocation0]]
  $region65: #{tpu_custom_call.1} parent=0
    _
  %s8 = ssub.s32 1, %s6
  %s9 = scalar_select 0, %s8, %s6
  $region1: #{tpu_custom_call.1} parent=0
    #allocation4 [shape = 'u8[65536]{0}', space=vmem, size = 0x10000, scoped, tag = 'input window, operand 3, single buffered']
    #allocation5 [shape = 's32[2]{0}', space=sflag, size = 0x8, scoped, tag = 'scoped memory for tpu_custom_call.1']
    #allocation6 [shape = 's32[2]{0}', space=sflag, size = 0x8, scoped, tag = 'scoped memory for tpu_custom_call.1']
    #allocation7 [shape = 'u8[65536]{0}', space=vmem, size = 0x10000, scoped, tag = 'output window, operand 0, single buffered']
    %10 = vsyncpa [#allocation5], 0
    %11 = vsyncpa [#allocation6], 0
    loop: start=0, step=1, limit=6
    $region2: #{tpu_custom_call.1} parent=1 // loop_pre_header
      _
    $region3: #{tpu_custom_call.1} parent=1 // loop_header
      %s13 = sphi 0, %s17
      %p14 = scmp.ge.s32.totalorder %s13, 6
      %s20 = sphi 0, %s32
      %s21 = sphi 0, %s28
      %s22 = sphi 0, %s20
      %s23 = sphi 0, %s21
      %s24 = sphi 0, %s22
      %s25 = sphi 0, %s23
      %s35 = sphi 0, %s37
      %s38 = sphi 0, %s35
      %s39 = sphi 0, %s38
      %s55 = sphi 0, %s39
      %s59 = sphi 0, %s59
      %s61 = sphi 0, %s59
      %s62 = sphi 0, %s61
      %s76 = sphi 0, %s62
      %s82 = sphi 0, %s84
      %s85 = sphi 0, %s82
      %s86 = sphi 0, %s85
      %s102 = sphi 0, %s86
      %s106 = sphi 0, %s106
      %s108 = sphi 0, %s106
      %s109 = sphi 0, %s108
      %s123 = sphi 0, %s109
      %s127 = sphi 0, %s127
      %s129 = sphi 0, %s127
      %s130 = sphi 0, %s129
      %s144 = sphi 0, %s130
      %s150 = sphi 0, %s152
      %s153 = sphi 0, %s150
      %s154 = sphi 0, %s153
      %s170 = sphi 0, %s154
    $region4: #{tpu_custom_call.1} parent=1 // loop_header_branch
      %16 = sbr.rel (%p14) target = $region8
    $region5: #{tpu_custom_call.1} parent=1 // loop_body
      %s18 = ssub.s32 %s13, 1
      %s19 = ssub.s32 %s13, 2
      %s26 = sadd.s32 1, %s21
      %p27 = scmp.ge.s32.totalorder %s26, 4
      %s28 = scalar_select %p27, 0, %s26
      %s29 = sadd.s32 1, %s20
      %s30 = scalar_select %p27, %s29, %s20
      %p31 = scmp.ge.s32.totalorder %s30, 1
      %s32 = scalar_select %p31, 0, %s30
      %s33 = ssub.s32 %s21, %s28
      %p34 = scmp.eq.s32.totalorder %s33, 0
      %s36 = sadd.s32 %s35, 1
      %s37 = scalar_select %p34, %s35, %s36
      %p40 = pneg %p34
      %p41 = scmp.eq.s32.totalorder %s13, 3
      %p42 = por %p40, %p41
      %p43 = scmp.ne.s32.totalorder %s35, %s38
      %p44 = scmp.eq.s32.totalorder %s13, 0
      %p45 = por %p43, %p44
      %p46 = scmp.ne.s32.totalorder %s35, %s38
      %p47 = scmp.eq.s32.totalorder %s18, 3
      %p48 = por %p46, %p47
      %p49 = scmp.ne.s32.totalorder %s38, %s39
      %p50 = scmp.eq.s32.totalorder %s18, 0
      %p51 = por %p49, %p50
      %p52 = scmp.ne.s32.totalorder %s38, %s39
      %p53 = scmp.eq.s32.totalorder %s19, 3
      %p54 = por %p52, %p53
      %p56 = scmp.ne.s32.totalorder %s39, %s55
      %p57 = scmp.eq.s32.totalorder %s19, 0
      %p58 = por %p56, %p57
      %s60 = sadd.s32 %s59, 1
      %p63 = scmp.eq.s32.totalorder %s13, 3
      %p64 = scmp.ne.s32.totalorder %s59, %s61
      %p65 = scmp.eq.s32.totalorder %s13, 0
      %p66 = por %p64, %p65
      %p67 = scmp.ne.s32.totalorder %s59, %s61
      %p68 = scmp.eq.s32.totalorder %s18, 3
      %p69 = por %p67, %p68
      %p70 = scmp.ne.s32.totalorder %s61, %s62
      %p71 = scmp.eq.s32.totalorder %s18, 0
      %p72 = por %p70, %p71
      %p73 = scmp.ne.s32.totalorder %s61, %s62
      %p74 = scmp.eq.s32.totalorder %s19, 3
      %p75 = por %p73, %p74
      %p77 = scmp.ne.s32.totalorder %s62, %s76
      %p78 = scmp.eq.s32.totalorder %s19, 0
      %p79 = por %p77, %p78
      %s80 = ssub.s32 %s20, %s32
      %p81 = scmp.eq.s32.totalorder %s80, 0
      %s83 = sadd.s32 %s82, 1
      %s84 = scalar_select %p81, %s82, %s83
      %p87 = pneg %p81
      %p88 = scmp.eq.s32.totalorder %s13, 3
      %p89 = por %p87, %p88
      %p90 = scmp.ne.s32.totalorder %s82, %s85
      %p91 = scmp.eq.s32.totalorder %s13, 0
      %p92 = por %p90, %p91
      %p93 = scmp.ne.s32.totalorder %s82, %s85
      %p94 = scmp.eq.s32.totalorder %s18, 3
      %p95 = por %p93, %p94
      %p96 = scmp.ne.s32.totalorder %s85, %s86
      %p97 = scmp.eq.s32.totalorder %s18, 0
      %p98 = por %p96, %p97
      %p99 = scmp.ne.s32.totalorder %s85, %s86
      %p100 = scmp.eq.s32.totalorder %s19, 3
      %p101 = por %p99, %p100
      %p103 = scmp.ne.s32.totalorder %s86, %s102
      %p104 = scmp.eq.s32.totalorder %s19, 0
      %p105 = por %p103, %p104
      %s107 = sadd.s32 %s106, 1
      %p110 = scmp.eq.s32.totalorder %s13, 3
      %p111 = scmp.ne.s32.totalorder %s106, %s108
      %p112 = scmp.eq.s32.totalorder %s13, 0
      %p113 = por %p111, %p112
      %p114 = scmp.ne.s32.totalorder %s106, %s108
      %p115 = scmp.eq.s32.totalorder %s18, 3
      %p116 = por %p114, %p115
      %p117 = scmp.ne.s32.totalorder %s108, %s109
      %p118 = scmp.eq.s32.totalorder %s18, 0
      %p119 = por %p117, %p118
      %p120 = scmp.ne.s32.totalorder %s108, %s109
      %p121 = scmp.eq.s32.totalorder %s19, 3
      %p122 = por %p120, %p121
      %p124 = scmp.ne.s32.totalorder %s109, %s123
      %p125 = scmp.eq.s32.totalorder %s19, 0
      %p126 = por %p124, %p125
      %s128 = sadd.s32 %s127, 1
      %p131 = scmp.eq.s32.totalorder %s13, 3
      %p132 = scmp.ne.s32.totalorder %s127, %s129
      %p133 = scmp.eq.s32.totalorder %s13, 0
      %p134 = por %p132, %p133
      %p135 = scmp.ne.s32.totalorder %s127, %s129
      %p136 = scmp.eq.s32.totalorder %s18, 3
      %p137 = por %p135, %p136
      %p138 = scmp.ne.s32.totalorder %s129, %s130
      %p139 = scmp.eq.s32.totalorder %s18, 0
      %p140 = por %p138, %p139
      %p141 = scmp.ne.s32.totalorder %s129, %s130
      %p142 = scmp.eq.s32.totalorder %s19, 3
      %p143 = por %p141, %p142
      %p145 = scmp.ne.s32.totalorder %s130, %s144
      %p146 = scmp.eq.s32.totalorder %s19, 0
      %p147 = por %p145, %p146
      %s148 = ssub.s32 %s20, %s32
      %p149 = scmp.eq.s32.totalorder %s148, 0
      %s151 = sadd.s32 %s150, 1
      %s152 = scalar_select %p149, %s150, %s151
      %p155 = pneg %p149
      %p156 = scmp.eq.s32.totalorder %s13, 3
      %p157 = por %p155, %p156
      %p158 = scmp.ne.s32.totalorder %s150, %s153
      %p159 = scmp.eq.s32.totalorder %s13, 0
      %p160 = por %p158, %p159
      %p161 = scmp.ne.s32.totalorder %s150, %s153
      %p162 = scmp.eq.s32.totalorder %s18, 3
      %p163 = por %p161, %p162
      %p164 = scmp.ne.s32.totalorder %s153, %s154
      %p165 = scmp.eq.s32.totalorder %s18, 0
      %p166 = por %p164, %p165
      %p167 = scmp.ne.s32.totalorder %s153, %s154
      %p168 = scmp.eq.s32.totalorder %s19, 3
      %p169 = por %p167, %p168
      %p171 = scmp.ne.s32.totalorder %s154, %s170
      %p172 = scmp.eq.s32.totalorder %s19, 0
      %p173 = por %p171, %p172
      %p174 = scmp.le.s32.totalorder 1, %s13
      %p175 = scmp.lt.s32.totalorder %s13, 5
      %p176 = pnand %p174, %p175
      %p177 = pneg %p176
      // Predicated region
      $region9: #{tpu_custom_call.1} parent=5 // pred_check
        _
      $region10: #{tpu_custom_call.1} parent=5 // pred_check_branch
        %179 = sbr.rel (%p176) target = $region12
      $region11: #{tpu_custom_call.1} parent=5 // pred_region
        %s180 = ssub.s32 %s13, 1
        // Predicated region
        $region13: #{tpu_custom_call.1} parent=11 // pred_check
          %p181 = pneg %p72
        $region14: #{tpu_custom_call.1} parent=11 // pred_check_branch
          %183 = sbr.rel (%p181) target = $region16
        $region15: #{tpu_custom_call.1} parent=11 // pred_region
          _
        $region16: #{tpu_custom_call.1} parent=11 // pred_fallthru
          _
        // Predicated region
        $region17: #{tpu_custom_call.1} parent=11 // pred_check
          %p184 = pneg %p98
        $region18: #{tpu_custom_call.1} parent=11 // pred_check_branch
          %186 = sbr.rel (%p184) target = $region20
        $region19: #{tpu_custom_call.1} parent=11 // pred_region
          %s187 = smul.u32 16, %s22
          %p188 = scmp.lt.s32.totalorder %s187, 15
          %s189 = scalar_select %p188, %s187, 15
          %s190 = smul.addr %s189, 8
          %s191 = scalar_lea.vmem %s2, %s190
          %s192 = smul.u32 16, %s22
        $region20: #{tpu_custom_call.1} parent=11 // pred_fallthru
          _
        // Predicated region
        $region21: #{tpu_custom_call.1} parent=11 // pred_check
          %p193 = pneg %p119
        $region22: #{tpu_custom_call.1} parent=11 // pred_check_branch
          %195 = sbr.rel (%p193) target = $region24
        $region23: #{tpu_custom_call.1} parent=11 // pred_region
          %197 = vsyncadd [#allocation5], 0
          %s198 = sshll.u32 %s3, 4
          %s199 = int_to_ptr.hbm [resolvable:$true] %s198
          %s200 = sshll.u32 [#allocation4], 4
          %s201 = int_to_ptr.vmem [resolvable:$true] %s200
          %206 = dma.hbm_to_vmem [thread:$0]  %s199, 2048, %s201, [#allocation5], 128, 128, 8
        $region24: #{tpu_custom_call.1} parent=11 // pred_fallthru
          _
        // Predicated region
        $region25: #{tpu_custom_call.1} parent=11 // pred_check
          %p207 = pneg %p140
        $region26: #{tpu_custom_call.1} parent=11 // pred_check_branch
          %209 = sbr.rel (%p207) target = $region28
        $region27: #{tpu_custom_call.1} parent=11 // pred_region
          _
        $region28: #{tpu_custom_call.1} parent=11 // pred_fallthru
          _
      $region12: #{tpu_custom_call.1} parent=5 // pred_fallthru
        _
      %p210 = scmp.lt.s32.totalorder %s13, 4
      // Predicated region
      $region29: #{tpu_custom_call.1} parent=5 // pred_check
        %p211 = pneg %p210
      $region30: #{tpu_custom_call.1} parent=5 // pred_check_branch
        %213 = sbr.rel (%p211) target = $region32
      $region31: #{tpu_custom_call.1} parent=5 // pred_region
        // Predicated region
        $region33: #{tpu_custom_call.1} parent=31 // pred_check
          %p214 = pneg %p45
        $region34: #{tpu_custom_call.1} parent=31 // pred_check_branch
          %216 = sbr.rel (%p214) target = $region36
        $region35: #{tpu_custom_call.1} parent=31 // pred_region
          %p217 = scmp.lt.s32.totalorder %s21, 3
          %s218 = scalar_select %p217, %s21, 3
          %s219 = smul.addr %s218, 8
          %s220 = scalar_lea.vmem %s0, %s219
        $region36: #{tpu_custom_call.1} parent=31 // pred_fallthru
          _
      $region32: #{tpu_custom_call.1} parent=5 // pred_fallthru
        _
      %p221 = scmp.le.s32.totalorder 1, %s13
      %p222 = scmp.lt.s32.totalorder %s13, 5
      %p223 = pnand %p221, %p222
      %p224 = pneg %p223
      // Predicated region
      $region37: #{tpu_custom_call.1} parent=5 // pred_check
        _
      $region38: #{tpu_custom_call.1} parent=5 // pred_check_branch
        %226 = sbr.rel (%p223) target = $region40
      $region39: #{tpu_custom_call.1} parent=5 // pred_region
        %s227 = ssub.s32 %s13, 1
        // Predicated region
        $region41: #{tpu_custom_call.1} parent=39 // pred_check
          %p228 = pneg %p119
        $region42: #{tpu_custom_call.1} parent=39 // pred_check_branch
          %230 = sbr.rel (%p228) target = $region44
        $region43: #{tpu_custom_call.1} parent=39 // pred_region
          %232 = dma.done [#allocation5], 2048
        $region44: #{tpu_custom_call.1} parent=39 // pred_fallthru
          _
        %p233 = scmp.lt.s32.totalorder %s23, 3
        %s234 = scalar_select %p233, %s23, 3
        %s235 = smul.addr %s234, 8
        %s236 = scalar_lea.vmem %s0, %s235
        %p237 = pneg %p51
        %p238 = pneg %p48
        %p239 = pneg %p72
        %p240 = pneg %p69
        %s241 = smul.u32 16, %s22
        %p242 = scmp.lt.s32.totalorder %s241, 15
        %s243 = scalar_select %p242, %s241, 15
        %s244 = smul.addr %s243, 8
        %s245 = scalar_lea.vmem %s2, %s244
        %p246 = pneg %p98
        %p247 = pneg %p95
        %p248 = pneg %p119
        %p249 = pneg %p116
        %p250 = pneg %p140
        %p251 = pneg %p137
        %p252 = pneg %p166
        %p253 = pneg %p163
        %p254 = scmp.lt.s32.totalorder %s23, 3
        %s255 = scalar_select %p254, %s23, 3
        %s256 = smul.addr %s255, 8
        %s257 = scalar_lea.vmem %s0, %s256
        %s258 = smul.u32 16, %s22
        %p259 = scmp.lt.s32.totalorder %s258, 15
        %s260 = scalar_select %p259, %s258, 15
        %s261 = smul.addr %s260, 8
        %s262 = scalar_lea.vmem %s2, %s261
        %s263 = smul.u32 16, %s22
        %s264 = smul.u32 16, %s22
        %p265 = scmp.eq.s32.totalorder %s23, 0
        // Predicated region
        $region45: #{tpu_custom_call.1} parent=39 // pred_check
          %p266 = pneg %p265
        $region46: #{tpu_custom_call.1} parent=39 // pred_check_branch
          %268 = sbr.rel (%p266) target = $region48
        $region47: #{tpu_custom_call.1} parent=39 // pred_region
          %v269 = vlaneseq
          %v270 = vand.u32 %v269, 127
          %271 = vst [vmem:[#allocation3] sm:$0x1] %v270
          %272 = vst [vmem:[#allocation2] sm:$0xff] 0.0
          %273 = vst [vmem:[#allocation2 + $0x8] sm:$0xff] 0.0
          %274 = vst [vmem:[#allocation2 + $0x10] sm:$0xff] 0.0
          %275 = vst [vmem:[#allocation2 + $0x18] sm:$0xff] 0.0
          %276 = vst [vmem:[#allocation2 + $0x20] sm:$0xff] 0.0
          %277 = vst [vmem:[#allocation2 + $0x28] sm:$0xff] 0.0
          %278 = vst [vmem:[#allocation2 + $0x30] sm:$0xff] 0.0
          %279 = vst [vmem:[#allocation2 + $0x38] sm:$0xff] 0.0
          %280 = vst [vmem:[#allocation2 + $0x40] sm:$0xff] 0.0
          %281 = vst [vmem:[#allocation2 + $0x48] sm:$0xff] 0.0
          %282 = vst [vmem:[#allocation2 + $0x50] sm:$0xff] 0.0
          %283 = vst [vmem:[#allocation2 + $0x58] sm:$0xff] 0.0
          %284 = vst [vmem:[#allocation2 + $0x60] sm:$0xff] 0.0
          %285 = vst [vmem:[#allocation2 + $0x68] sm:$0xff] 0.0
          %286 = vst [vmem:[#allocation2 + $0x70] sm:$0xff] 0.0
          %287 = vst [vmem:[#allocation2 + $0x78] sm:$0xff] 0.0
        $region48: #{tpu_custom_call.1} parent=39 // pred_fallthru
          _
        %v288 = vld [vmem:[%s257] sm:$0xff]
        %v289 = vld [vmem:[#allocation3] sm:$0x1]
        %290 = vset.pattern.permute.xlu0 0
        %291 = vperm.xlu0 %290, %v288
        %v292 = vpop.permute.xlu0 %291
        %v293 = vperm.slane %v289, 0
        %vm294 = vcmp.eq.s32.totalorder %v292, %v293
        %v295 = vsel %vm294, 1, 0
        %v296 = vcvt.s32.f32 %v295
        %s297 = smul.u32 %s22, 128
        %v298 = vstv %s297
        %v299 = vsub.s32 %v288, %v298
        %300 = vset.pattern.permute.xlu0 1
        %301 = vperm.xlu0 %300, %v299
        %v302 = vpop.permute.xlu0 %301
        %vm303 = vcmp.eq.s32.totalorder %v302, %v293
        %v304 = vsel %vm303, 1, 0
        %v305 = vcvt.s32.f32 %v304
        %v306 = vld [vmem:[%s1] sm:$0xff]
        %v307 = vld [vmem:[%s1 + $0x8] sm:$0xff]
        %v308 = vld [vmem:[%s1 + $0x10] sm:$0xff]
        %v309 = vld [vmem:[%s1 + $0x18] sm:$0xff]
        %v310 = vld [vmem:[%s1 + $0x20] sm:$0xff]
        %v311 = vld [vmem:[%s1 + $0x28] sm:$0xff]
        %v312 = vld [vmem:[%s1 + $0x30] sm:$0xff]
        %v313 = vld [vmem:[%s1 + $0x38] sm:$0xff]
        %v314 = vld [vmem:[%s1 + $0x40] sm:$0xff]
        %v315 = vld [vmem:[%s1 + $0x48] sm:$0xff]
        %v316 = vld [vmem:[%s1 + $0x50] sm:$0xff]
        %v317 = vld [vmem:[%s1 + $0x58] sm:$0xff]
        %v318 = vld [vmem:[%s1 + $0x60] sm:$0xff]
        %v319 = vld [vmem:[%s1 + $0x68] sm:$0xff]
        %v320 = vld [vmem:[%s1 + $0x70] sm:$0xff]
        %v321 = vld [vmem:[%s1 + $0x78] sm:$0xff]
        %322 = vmatpush.msra.mxu0 %v321
        %323 = vmatpush.msra.mxu0 %v320
        %324 = vmatpush.msra.mxu0 %v319
        %325 = vmatpush.msra.mxu0 %v318
        %326 = vmatpush.msra.mxu0 %v317
        %327 = vmatpush.msra.mxu0 %v316
        %328 = vmatpush.msra.mxu0 %v315
        %329 = vmatpush.msra.mxu0 %v314
        %330 = vmatpush.msra.mxu0 %v313
        %331 = vmatpush.msra.mxu0 %v312
        %332 = vmatpush.msra.mxu0 %v311
        %333 = vmatpush.msra.mxu0 %v310
        %334 = vmatpush.msra.mxu0 %v309
        %335 = vmatpush.msra.mxu0 %v308
        %336 = vmatpush.msra.mxu0 %v307
        %337 = vmatpush.msra.mxu0 %v306
        %338 = vmatmul.f32.gmra.mxu0 %v296
        %v339 = vpop.f32.mrf.mxu0
        %v340 = vadd.f32 0.0, %v339
        %341 = vdwg.mxu0
        %342 = vset.pattern.permute.xlu0 2
        %343 = vperm.xlu0 %342, %v288
        %v344 = vpop.permute.xlu0 %343
        %v346 = vmul.f32 %v340, %v344
        %v347 = vld [vmem:[#allocation2] sm:$0xff]
        %v348 = vld [vmem:[#allocation2 + $0x8] sm:$0xff]
        %v349 = vld [vmem:[#allocation2 + $0x10] sm:$0xff]
        %v350 = vld [vmem:[#allocation2 + $0x18] sm:$0xff]
        %v351 = vld [vmem:[#allocation2 + $0x20] sm:$0xff]
        %v352 = vld [vmem:[#allocation2 + $0x28] sm:$0xff]
        %v353 = vld [vmem:[#allocation2 + $0x30] sm:$0xff]
        %v354 = vld [vmem:[#allocation2 + $0x38] sm:$0xff]
        %v355 = vld [vmem:[#allocation2 + $0x40] sm:$0xff]
        %v356 = vld [vmem:[#allocation2 + $0x48] sm:$0xff]
        %v357 = vld [vmem:[#allocation2 + $0x50] sm:$0xff]
        %v358 = vld [vmem:[#allocation2 + $0x58] sm:$0xff]
        %v359 = vld [vmem:[#allocation2 + $0x60] sm:$0xff]
        %v360 = vld [vmem:[#allocation2 + $0x68] sm:$0xff]
        %v361 = vld [vmem:[#allocation2 + $0x70] sm:$0xff]
        %v362 = vld [vmem:[#allocation2 + $0x78] sm:$0xff]
        %363 = vxpose.xlu0.b32.start [1/16] %v305, 128
        %364 = vxpose.xlu0.b32.cont [2/16] 0.0, 128
        %365 = vxpose.xlu0.b32.cont [3/16] 0.0, 128
        %366 = vxpose.xlu0.b32.cont [4/16] 0.0, 128
        %367 = vxpose.xlu0.b32.cont [5/16] 0.0, 128
        %368 = vxpose.xlu0.b32.cont [6/16] 0.0, 128
        %369 = vxpose.xlu0.b32.cont [7/16] 0.0, 128
        %370 = vxpose.xlu0.b32.cont [8/16] 0.0, 128
        %371 = vxpose.xlu0.b32.cont [9/16] 0.0, 128
        %372 = vxpose.xlu0.b32.cont [10/16] 0.0, 128
        %373 = vxpose.xlu0.b32.cont [11/16] 0.0, 128
        %374 = vxpose.xlu0.b32.cont [12/16] 0.0, 128
        %375 = vxpose.xlu0.b32.cont [13/16] 0.0, 128
        %376 = vxpose.xlu0.b32.cont [14/16] 0.0, 128
        %377 = vxpose.xlu0.b32.cont [15/16] 0.0, 128
        %378 = vxpose.xlu0.b32.end [16/16] 0.0, 128
        %v379 = vpop.trf.xlu0
        %v380 = vpop.trf.xlu0
        %v381 = vpop.trf.xlu0
        %v382 = vpop.trf.xlu0
        %v383 = vpop.trf.xlu0
        %v384 = vpop.trf.xlu0
        %v385 = vpop.trf.xlu0
        %v386 = vpop.trf.xlu0
        %v387 = vpop.trf.xlu0
        %v388 = vpop.trf.xlu0
        %v389 = vpop.trf.xlu0
        %v390 = vpop.trf.xlu0
        %v391 = vpop.trf.xlu0
        %v392 = vpop.trf.xlu0
        %v393 = vpop.trf.xlu0
        %v394 = vpop.trf.xlu0
        %vm395 = vcmask 64512
        %v397 = vsel %vm395, %v379, 0
        %v400 = vsel %vm395, %v380, 0
        %v403 = vsel %vm395, %v381, 0
        %v406 = vsel %vm395, %v382, 0
        %v409 = vsel %vm395, %v383, 0
        %v412 = vsel %vm395, %v384, 0
        %v415 = vsel %vm395, %v385, 0
        %v418 = vsel %vm395, %v386, 0
        %v421 = vsel %vm395, %v387, 0
        %v424 = vsel %vm395, %v388, 0
        %v427 = vsel %vm395, %v389, 0
        %v430 = vsel %vm395, %v390, 0
        %v433 = vsel %vm395, %v391, 0
        %v436 = vsel %vm395, %v392, 0
        %v439 = vsel %vm395, %v393, 0
        %v442 = vsel %vm395, %v394, 0
        %444 = vmatpush.msra.mxu0 0.0
        %445 = vmatpush.msra.mxu0 0.0
        %446 = vmatpush.msra.mxu0 0.0
        %447 = vmatpush.msra.mxu0 0.0
        %448 = vmatpush.msra.mxu0 0.0
        %449 = vmatpush.msra.mxu0 0.0
        %450 = vmatpush.msra.mxu0 0.0
        %451 = vmatpush.msra.mxu0 0.0
        %452 = vmatpush.msra.mxu0 0.0
        %453 = vmatpush.msra.mxu0 0.0
        %454 = vmatpush.msra.mxu0 0.0
        %455 = vmatpush.msra.mxu0 0.0
        %456 = vmatpush.msra.mxu0 0.0
        %457 = vmatpush.msra.mxu0 0.0
        %458 = vmatpush.msra.mxu0 0.0
        %459 = vmatpush.msra.mxu0 %v346
        %460 = vmatmul.f32.gmra.mxu0 %v397
        %v461 = vpop.f32.mrf.mxu0
        %v462 = vadd.f32 0.0, %v461
        %463 = vmatmul.f32.gmra.mxu0 %v400
        %v464 = vpop.f32.mrf.mxu0
        %v465 = vadd.f32 0.0, %v464
        %466 = vmatmul.f32.gmra.mxu0 %v403
        %v467 = vpop.f32.mrf.mxu0
        %v468 = vadd.f32 0.0, %v467
        %469 = vmatmul.f32.gmra.mxu0 %v406
        %v470 = vpop.f32.mrf.mxu0
        %v471 = vadd.f32 0.0, %v470
        %472 = vmatmul.f32.gmra.mxu0 %v409
        %v473 = vpop.f32.mrf.mxu0
        %v474 = vadd.f32 0.0, %v473
        %475 = vmatmul.f32.gmra.mxu0 %v412
        %v476 = vpop.f32.mrf.mxu0
        %v477 = vadd.f32 0.0, %v476
        %478 = vmatmul.f32.gmra.mxu0 %v415
        %v479 = vpop.f32.mrf.mxu0
        %v480 = vadd.f32 0.0, %v479
        %481 = vmatmul.f32.gmra.mxu0 %v418
        %v482 = vpop.f32.mrf.mxu0
        %v483 = vadd.f32 0.0, %v482
        %484 = vmatmul.f32.gmra.mxu0 %v421
        %v485 = vpop.f32.mrf.mxu0
        %v486 = vadd.f32 0.0, %v485
        %487 = vmatmul.f32.gmra.mxu0 %v424
        %v488 = vpop.f32.mrf.mxu0
        %v489 = vadd.f32 0.0, %v488
        %490 = vmatmul.f32.gmra.mxu0 %v427
        %v491 = vpop.f32.mrf.mxu0
        %v492 = vadd.f32 0.0, %v491
        %493 = vmatmul.f32.gmra.mxu0 %v430
        %v494 = vpop.f32.mrf.mxu0
        %v495 = vadd.f32 0.0, %v494
        %496 = vmatmul.f32.gmra.mxu0 %v433
        %v497 = vpop.f32.mrf.mxu0
        %v498 = vadd.f32 0.0, %v497
        %499 = vmatmul.f32.gmra.mxu0 %v436
        %v500 = vpop.f32.mrf.mxu0
        %v501 = vadd.f32 0.0, %v500
        %502 = vmatmul.f32.gmra.mxu0 %v439
        %v503 = vpop.f32.mrf.mxu0
        %v504 = vadd.f32 0.0, %v503
        %505 = vmatmul.f32.gmra.mxu0 %v442
        %v506 = vpop.f32.mrf.mxu0
        %v507 = vadd.f32 0.0, %v506
        %508 = vdwg.mxu0
        %v509 = vadd.f32 %v347, %v462
        %v510 = vadd.f32 %v348, %v465
        %v511 = vadd.f32 %v349, %v468
        %v512 = vadd.f32 %v350, %v471
        %v513 = vadd.f32 %v351, %v474
        %v514 = vadd.f32 %v352, %v477
        %v515 = vadd.f32 %v353, %v480
        %v516 = vadd.f32 %v354, %v483
        %v517 = vadd.f32 %v355, %v486
        %v518 = vadd.f32 %v356, %v489
        %v519 = vadd.f32 %v357, %v492
        %v520 = vadd.f32 %v358, %v495
        %v521 = vadd.f32 %v359, %v498
        %v522 = vadd.f32 %v360, %v501
        %v523 = vadd.f32 %v361, %v504
        %v524 = vadd.f32 %v362, %v507
        %525 = vst [vmem:[#allocation2] sm:$0xff] %v509
        %526 = vst [vmem:[#allocation2 + $0x8] sm:$0xff] %v510
        %527 = vst [vmem:[#allocation2 + $0x10] sm:$0xff] %v511
        %528 = vst [vmem:[#allocation2 + $0x18] sm:$0xff] %v512
        %529 = vst [vmem:[#allocation2 + $0x20] sm:$0xff] %v513
        %530 = vst [vmem:[#allocation2 + $0x28] sm:$0xff] %v514
        %531 = vst [vmem:[#allocation2 + $0x30] sm:$0xff] %v515
        %532 = vst [vmem:[#allocation2 + $0x38] sm:$0xff] %v516
        %533 = vst [vmem:[#allocation2 + $0x40] sm:$0xff] %v517
        %534 = vst [vmem:[#allocation2 + $0x48] sm:$0xff] %v518
        %535 = vst [vmem:[#allocation2 + $0x50] sm:$0xff] %v519
        %536 = vst [vmem:[#allocation2 + $0x58] sm:$0xff] %v520
        %537 = vst [vmem:[#allocation2 + $0x60] sm:$0xff] %v521
        %538 = vst [vmem:[#allocation2 + $0x68] sm:$0xff] %v522
        %539 = vst [vmem:[#allocation2 + $0x70] sm:$0xff] %v523
        %540 = vst [vmem:[#allocation2 + $0x78] sm:$0xff] %v524
        %p541 = scmp.eq.s32.totalorder %s23, 3
        // Predicated region
        $region49: #{tpu_custom_call.1} parent=39 // pred_check
          %p542 = pneg %p541
        $region50: #{tpu_custom_call.1} parent=39 // pred_check_branch
          %544 = sbr.rel (%p542) target = $region52
        $region51: #{tpu_custom_call.1} parent=39 // pred_region
          %v545 = vld [vmem:[#allocation2] sm:$0xff]
          %v546 = vld [vmem:[#allocation2 + $0x8] sm:$0xff]
          %v547 = vld [vmem:[#allocation2 + $0x10] sm:$0xff]
          %v548 = vld [vmem:[#allocation2 + $0x18] sm:$0xff]
          %v549 = vld [vmem:[#allocation2 + $0x20] sm:$0xff]
          %v550 = vld [vmem:[#allocation2 + $0x28] sm:$0xff]
          %v551 = vld [vmem:[#allocation2 + $0x30] sm:$0xff]
          %v552 = vld [vmem:[#allocation2 + $0x38] sm:$0xff]
          %v553 = vld [vmem:[#allocation2 + $0x40] sm:$0xff]
          %v554 = vld [vmem:[#allocation2 + $0x48] sm:$0xff]
          %v555 = vld [vmem:[#allocation2 + $0x50] sm:$0xff]
          %v556 = vld [vmem:[#allocation2 + $0x58] sm:$0xff]
          %v557 = vld [vmem:[#allocation2 + $0x60] sm:$0xff]
          %v558 = vld [vmem:[#allocation2 + $0x68] sm:$0xff]
          %v559 = vld [vmem:[#allocation2 + $0x70] sm:$0xff]
          %v560 = vld [vmem:[#allocation2 + $0x78] sm:$0xff]
          %v561 = vld [vmem:[%s262] sm:$0xff]
          %v562 = vld [vmem:[%s262 + $0x8] sm:$0xff]
          %v563 = vld [vmem:[%s262 + $0x10] sm:$0xff]
          %v564 = vld [vmem:[%s262 + $0x18] sm:$0xff]
          %v565 = vld [vmem:[%s262 + $0x20] sm:$0xff]
          %v566 = vld [vmem:[%s262 + $0x28] sm:$0xff]
          %v567 = vld [vmem:[%s262 + $0x30] sm:$0xff]
          %v568 = vld [vmem:[%s262 + $0x38] sm:$0xff]
          %v569 = vld [vmem:[%s262 + $0x40] sm:$0xff]
          %v570 = vld [vmem:[%s262 + $0x48] sm:$0xff]
          %v571 = vld [vmem:[%s262 + $0x50] sm:$0xff]
          %v572 = vld [vmem:[%s262 + $0x58] sm:$0xff]
          %v573 = vld [vmem:[%s262 + $0x60] sm:$0xff]
          %v574 = vld [vmem:[%s262 + $0x68] sm:$0xff]
          %v575 = vld [vmem:[%s262 + $0x70] sm:$0xff]
          %v576 = vld [vmem:[%s262 + $0x78] sm:$0xff]
          %578 = vset.pattern.permute.xlu0 0
          %579 = vperm.xlu0 %578, %v561
          %v580 = vpop.permute.xlu0 %579
          %583 = vset.pattern.permute.xlu0 0
          %584 = vperm.xlu0 %583, %v562
          %v585 = vpop.permute.xlu0 %584
          %588 = vset.pattern.permute.xlu0 0
          %589 = vperm.xlu0 %588, %v563
          %v590 = vpop.permute.xlu0 %589
          %593 = vset.pattern.permute.xlu0 0
          %594 = vperm.xlu0 %593, %v564
          %v595 = vpop.permute.xlu0 %594
          %598 = vset.pattern.permute.xlu0 0
          %599 = vperm.xlu0 %598, %v565
          %v600 = vpop.permute.xlu0 %599
          %603 = vset.pattern.permute.xlu0 0
          %604 = vperm.xlu0 %603, %v566
          %v605 = vpop.permute.xlu0 %604
          %608 = vset.pattern.permute.xlu0 0
          %609 = vperm.xlu0 %608, %v567
          %v610 = vpop.permute.xlu0 %609
          %613 = vset.pattern.permute.xlu0 0
          %614 = vperm.xlu0 %613, %v568
          %v615 = vpop.permute.xlu0 %614
          %618 = vset.pattern.permute.xlu0 0
          %619 = vperm.xlu0 %618, %v569
          %v620 = vpop.permute.xlu0 %619
          %623 = vset.pattern.permute.xlu0 0
          %624 = vperm.xlu0 %623, %v570
          %v625 = vpop.permute.xlu0 %624
          %628 = vset.pattern.permute.xlu0 0
          %629 = vperm.xlu0 %628, %v571
          %v630 = vpop.permute.xlu0 %629
          %633 = vset.pattern.permute.xlu0 0
          %634 = vperm.xlu0 %633, %v572
          %v635 = vpop.permute.xlu0 %634
          %638 = vset.pattern.permute.xlu0 0
          %639 = vperm.xlu0 %638, %v573
          %v640 = vpop.permute.xlu0 %639
          %643 = vset.pattern.permute.xlu0 0
          %644 = vperm.xlu0 %643, %v574
          %v645 = vpop.permute.xlu0 %644
          %648 = vset.pattern.permute.xlu0 0
          %649 = vperm.xlu0 %648, %v575
          %v650 = vpop.permute.xlu0 %649
          %653 = vset.pattern.permute.xlu0 0
          %654 = vperm.xlu0 %653, %v576
          %v655 = vpop.permute.xlu0 %654
          %v657 = vmul.f32 %v545, %v580
          %v658 = vmul.f32 %v546, %v585
          %v659 = vmul.f32 %v547, %v590
          %v660 = vmul.f32 %v548, %v595
          %v661 = vmul.f32 %v549, %v600
          %v662 = vmul.f32 %v550, %v605
          %v663 = vmul.f32 %v551, %v610
          %v664 = vmul.f32 %v552, %v615
          %v665 = vmul.f32 %v553, %v620
          %v666 = vmul.f32 %v554, %v625
          %v667 = vmul.f32 %v555, %v630
          %v668 = vmul.f32 %v556, %v635
          %v669 = vmul.f32 %v557, %v640
          %v670 = vmul.f32 %v558, %v645
          %v671 = vmul.f32 %v559, %v650
          %v672 = vmul.f32 %v560, %v655
          %v673 = vld [vmem:[#allocation4] sm:$0xff]
          %v674 = vld [vmem:[#allocation4 + $0x8] sm:$0xff]
          %v675 = vld [vmem:[#allocation4 + $0x10] sm:$0xff]
          %v676 = vld [vmem:[#allocation4 + $0x18] sm:$0xff]
          %v677 = vld [vmem:[#allocation4 + $0x20] sm:$0xff]
          %v678 = vld [vmem:[#allocation4 + $0x28] sm:$0xff]
          %v679 = vld [vmem:[#allocation4 + $0x30] sm:$0xff]
          %v680 = vld [vmem:[#allocation4 + $0x38] sm:$0xff]
          %v681 = vld [vmem:[#allocation4 + $0x40] sm:$0xff]
          %v682 = vld [vmem:[#allocation4 + $0x48] sm:$0xff]
          %v683 = vld [vmem:[#allocation4 + $0x50] sm:$0xff]
          %v684 = vld [vmem:[#allocation4 + $0x58] sm:$0xff]
          %v685 = vld [vmem:[#allocation4 + $0x60] sm:$0xff]
          %v686 = vld [vmem:[#allocation4 + $0x68] sm:$0xff]
          %v687 = vld [vmem:[#allocation4 + $0x70] sm:$0xff]
          %v688 = vld [vmem:[#allocation4 + $0x78] sm:$0xff]
          %v689 = vld [vmem:[%s4] sm:$0x1]
          %v691 = vperm.slane %v689, 0
          %693 = vmatpush.xpose.msra.mxu0 %v688
          %694 = vmatpush.xpose.msra.mxu0 %v687
          %695 = vmatpush.xpose.msra.mxu0 %v686
          %696 = vmatpush.xpose.msra.mxu0 %v685
          %697 = vmatpush.xpose.msra.mxu0 %v684
          %698 = vmatpush.xpose.msra.mxu0 %v683
          %699 = vmatpush.xpose.msra.mxu0 %v682
          %700 = vmatpush.xpose.msra.mxu0 %v681
          %701 = vmatpush.xpose.msra.mxu0 %v680
          %702 = vmatpush.xpose.msra.mxu0 %v679
          %703 = vmatpush.xpose.msra.mxu0 %v678
          %704 = vmatpush.xpose.msra.mxu0 %v677
          %705 = vmatpush.xpose.msra.mxu0 %v676
          %706 = vmatpush.xpose.msra.mxu0 %v675
          %707 = vmatpush.xpose.msra.mxu0 %v674
          %708 = vmatpush.xpose.msra.mxu0 %v673
          %709 = vmatmul.f32.gmra.mxu0 %v657
          %v710 = vpop.f32.mrf.mxu0
          %v711 = vadd.f32 %v691, %v710
          %712 = vmatmul.f32.gmra.mxu0 %v658
          %v713 = vpop.f32.mrf.mxu0
          %v714 = vadd.f32 %v691, %v713
          %715 = vmatmul.f32.gmra.mxu0 %v659
          %v716 = vpop.f32.mrf.mxu0
          %v717 = vadd.f32 %v691, %v716
          %718 = vmatmul.f32.gmra.mxu0 %v660
          %v719 = vpop.f32.mrf.mxu0
          %v720 = vadd.f32 %v691, %v719
          %721 = vmatmul.f32.gmra.mxu0 %v661
          %v722 = vpop.f32.mrf.mxu0
          %v723 = vadd.f32 %v691, %v722
          %724 = vmatmul.f32.gmra.mxu0 %v662
          %v725 = vpop.f32.mrf.mxu0
          %v726 = vadd.f32 %v691, %v725
          %727 = vmatmul.f32.gmra.mxu0 %v663
          %v728 = vpop.f32.mrf.mxu0
          %v729 = vadd.f32 %v691, %v728
          %730 = vmatmul.f32.gmra.mxu0 %v664
          %v731 = vpop.f32.mrf.mxu0
          %v732 = vadd.f32 %v691, %v731
          %733 = vmatmul.f32.gmra.mxu0 %v665
          %v734 = vpop.f32.mrf.mxu0
          %v735 = vadd.f32 %v691, %v734
          %736 = vmatmul.f32.gmra.mxu0 %v666
          %v737 = vpop.f32.mrf.mxu0
          %v738 = vadd.f32 %v691, %v737
          %739 = vmatmul.f32.gmra.mxu0 %v667
          %v740 = vpop.f32.mrf.mxu0
          %v741 = vadd.f32 %v691, %v740
          %742 = vmatmul.f32.gmra.mxu0 %v668
          %v743 = vpop.f32.mrf.mxu0
          %v744 = vadd.f32 %v691, %v743
          %745 = vmatmul.f32.gmra.mxu0 %v669
          %v746 = vpop.f32.mrf.mxu0
          %v747 = vadd.f32 %v691, %v746
          %748 = vmatmul.f32.gmra.mxu0 %v670
          %v749 = vpop.f32.mrf.mxu0
          %v750 = vadd.f32 %v691, %v749
          %751 = vmatmul.f32.gmra.mxu0 %v671
          %v752 = vpop.f32.mrf.mxu0
          %v753 = vadd.f32 %v691, %v752
          %754 = vmatmul.f32.gmra.mxu0 %v672
          %v755 = vpop.f32.mrf.mxu0
          %v756 = vadd.f32 %v691, %v755
          %757 = vdwg.mxu0
          %758 = vst [vmem:[#allocation7] sm:$0xff] %v711
          %759 = vst [vmem:[#allocation7 + $0x8] sm:$0xff] %v714
          %760 = vst [vmem:[#allocation7 + $0x10] sm:$0xff] %v717
          %761 = vst [vmem:[#allocation7 + $0x18] sm:$0xff] %v720
          %762 = vst [vmem:[#allocation7 + $0x20] sm:$0xff] %v723
          %763 = vst [vmem:[#allocation7 + $0x28] sm:$0xff] %v726
          %764 = vst [vmem:[#allocation7 + $0x30] sm:$0xff] %v729
          %765 = vst [vmem:[#allocation7 + $0x38] sm:$0xff] %v732
          %766 = vst [vmem:[#allocation7 + $0x40] sm:$0xff] %v735
          %767 = vst [vmem:[#allocation7 + $0x48] sm:$0xff] %v738
          %768 = vst [vmem:[#allocation7 + $0x50] sm:$0xff] %v741
          %769 = vst [vmem:[#allocation7 + $0x58] sm:$0xff] %v744
          %770 = vst [vmem:[#allocation7 + $0x60] sm:$0xff] %v747
          %771 = vst [vmem:[#allocation7 + $0x68] sm:$0xff] %v750
          %772 = vst [vmem:[#allocation7 + $0x70] sm:$0xff] %v753
          %773 = vst [vmem:[#allocation7 + $0x78] sm:$0xff] %v756
        $region52: #{tpu_custom_call.1} parent=39 // pred_fallthru
          _
        // Predicated region
        $region53: #{tpu_custom_call.1} parent=39 // pred_check
          %p774 = pneg %p163
        $region54: #{tpu_custom_call.1} parent=39 // pred_check_branch
          %776 = sbr.rel (%p774) target = $region56
        $region55: #{tpu_custom_call.1} parent=39 // pred_region
          %s777 = smul.u32 16, %s22
          %779 = vsyncadd [#allocation6], 0
          %s780 = smul.addr %s777, 8
          %s781 = scalar_lea.hbm %s5, %s780
          %s782 = sshll.u32 [#allocation7], 4
          %s783 = int_to_ptr.vmem [resolvable:$true] %s782
          %s784 = sshll.u32 %s781, 4
          %s785 = int_to_ptr.hbm [resolvable:$true] %s784
          %790 = dma.vmem_to_hbm [thread:$0]  %s783, 2048, %s785, [#allocation6], 128, 128, 8
        $region56: #{tpu_custom_call.1} parent=39 // pred_fallthru
          _
        // Predicated region
        $region57: #{tpu_custom_call.1} parent=39 // pred_check
          %p791 = pneg %p163
        $region58: #{tpu_custom_call.1} parent=39 // pred_check_branch
          %793 = sbr.rel (%p791) target = $region60
        $region59: #{tpu_custom_call.1} parent=39 // pred_region
          %795 = dma.done [#allocation6], 2048
        $region60: #{tpu_custom_call.1} parent=39 // pred_fallthru
          _
      $region40: #{tpu_custom_call.1} parent=5 // pred_fallthru
        _
      %p796 = scmp.le.s32.totalorder 2, %s13
      // Predicated region
      $region61: #{tpu_custom_call.1} parent=5 // pred_check
        %p797 = pneg %p796
      $region62: #{tpu_custom_call.1} parent=5 // pred_check_branch
        %799 = sbr.rel (%p797) target = $region64
      $region63: #{tpu_custom_call.1} parent=5 // pred_region
        %s800 = ssub.s32 %s13, 2
      $region64: #{tpu_custom_call.1} parent=5 // pred_fallthru
        _
    $region6: #{tpu_custom_call.1} parent=1 // loop_footer
      %s17 = sadd.s32 1, %s13
    $region7: #{tpu_custom_call.1} parent=1 // loop_footer_branch
      %12 = sbr.rel target = $region3
    $region8: #{tpu_custom_call.1} parent=1 // loop_exit
      _
    %801 = vsyncpa [#allocation5], 1
    %s802 = scalar_lea.sflag [#allocation5], 1
    %803 = vsyncpa %s802, 1
    %804 = vsyncpa [#allocation6], 1
    %s805 = scalar_lea.sflag [#allocation6], 1
    %806 = vsyncpa %s805, 1

// kernel: tpu_custom_call.1
$region0: #{tpu_custom_call.1}
  #allocation0 [shape = 'u32[]', space=smem, size = 0x4, offset = 0x4, fixed_abs, tag = 'smem constant byte address 0x4 - core index']
  #allocation1 [shape = 'u32[72,128]{1,0:T(1,128)}', space=vmem, size = 0x9000, scoped, tag = 'internal scratch']
  #allocation2 [shape = 'f32[128,128]{1,0:T(8,128)}', space=vmem, size = 0x10000, scoped, tag = 'scratch operand']
  #allocation3 [shape = 's32[1,128]{1,0:T(1,128)}', space=vmem, size = 0x200, scoped, tag = 'scratch operand']
  %s0 = inlined_call_operand.vmem [shape: s32[32,3], index: 0, kind: input, shape index: {}]
  %s1 = inlined_call_operand.vmem [shape: f32[128,128], index: 1, kind: input, shape index: {}]
  %s2 = inlined_call_operand.vmem [shape: f32[128,1], index: 2, kind: input, shape index: {}]
  %s3 = inlined_call_operand.hbm [shape: f32[128,128], index: 3, kind: input, shape index: {}]
  %s4 = inlined_call_operand.vmem [shape: f32[1,128], index: 4, kind: input, shape index: {}]
  %s5 = inlined_call_operand.hbm [shape: f32[128,128], index: 5, kind: output, shape index: {}]
  %s6 = sld [smem:[#allocation0]]
  $region65: #{tpu_custom_call.1} parent=0
    _
  %s8 = ssub.s32 1, %s6
  %s9 = scalar_select 0, %s8, %s6
  $region1: #{tpu_custom_call.1} parent=0
    #allocation4 [shape = 'u8[65536]{0}', space=vmem, size = 0x10000, scoped, tag = 'input window, operand 3, single buffered']
    #allocation5 [shape = 's32[2]{0}', space=sflag, size = 0x8, scoped, tag = 'scoped memory for tpu_custom_call.1']
    #allocation6 [shape = 's32[2]{0}', space=sflag, size = 0x8, scoped, tag = 'scoped memory for tpu_custom_call.1']
    #allocation7 [shape = 'u8[65536]{0}', space=vmem, size = 0x10000, scoped, tag = 'output window, operand 0, single buffered']
    %10 = vsyncpa [#allocation5], 0
    %11 = vsyncpa [#allocation6], 0
    loop: start=0, step=1, limit=6
    $region2: #{tpu_custom_call.1} parent=1 // loop_pre_header
      _
    $region3: #{tpu_custom_call.1} parent=1 // loop_header
      %s13 = sphi 0, %s17
      %p14 = scmp.ge.s32.totalorder %s13, 6
      %s20 = sphi 0, %s32
      %s21 = sphi 0, %s28
      %s22 = sphi 0, %s20
      %s23 = sphi 0, %s21
      %s24 = sphi 0, %s22
      %s25 = sphi 0, %s23
      %s35 = sphi 0, %s37
      %s38 = sphi 0, %s35
      %s39 = sphi 0, %s38
      %s55 = sphi 0, %s39
      %s59 = sphi 0, %s59
      %s61 = sphi 0, %s59
      %s62 = sphi 0, %s61
      %s76 = sphi 0, %s62
      %s82 = sphi 0, %s84
      %s85 = sphi 0, %s82
      %s86 = sphi 0, %s85
      %s102 = sphi 0, %s86
      %s106 = sphi 0, %s106
      %s108 = sphi 0, %s106
      %s109 = sphi 0, %s108
      %s123 = sphi 0, %s109
      %s127 = sphi 0, %s127
      %s129 = sphi 0, %s127
      %s130 = sphi 0, %s129
      %s144 = sphi 0, %s130
      %s150 = sphi 0, %s152
      %s153 = sphi 0, %s150
      %s154 = sphi 0, %s153
      %s170 = sphi 0, %s154
    $region4: #{tpu_custom_call.1} parent=1 // loop_header_branch
      %16 = sbr.rel (%p14) target = $region8
    $region5: #{tpu_custom_call.1} parent=1 // loop_body
      %s18 = ssub.s32 %s13, 1
      %s19 = ssub.s32 %s13, 2
      %s26 = sadd.s32 1, %s21
      %p27 = scmp.ge.s32.totalorder %s26, 4
      %s28 = scalar_select %p27, 0, %s26
      %s29 = sadd.s32 1, %s20
      %s30 = scalar_select %p27, %s29, %s20
      %p31 = scmp.ge.s32.totalorder %s30, 1
      %s32 = scalar_select %p31, 0, %s30
      %s33 = ssub.s32 %s21, %s28
      %p34 = scmp.eq.s32.totalorder %s33, 0
      %s36 = sadd.s32 %s35, 1
      %s37 = scalar_select %p34, %s35, %s36
      %p40 = pneg %p34
      %p41 = scmp.eq.s32.totalorder %s13, 3
      %p42 = por %p40, %p41
      %p43 = scmp.ne.s32.totalorder %s35, %s38
      %p44 = scmp.eq.s32.totalorder %s13, 0
      %p45 = por %p43, %p44
      %p46 = scmp.ne.s32.totalorder %s35, %s38
      %p47 = scmp.eq.s32.totalorder %s18, 3
      %p48 = por %p46, %p47
      %p49 = scmp.ne.s32.totalorder %s38, %s39
      %p50 = scmp.eq.s32.totalorder %s18, 0
      %p51 = por %p49, %p50
      %p52 = scmp.ne.s32.totalorder %s38, %s39
      %p53 = scmp.eq.s32.totalorder %s19, 3
      %p54 = por %p52, %p53
      %p56 = scmp.ne.s32.totalorder %s39, %s55
      %p57 = scmp.eq.s32.totalorder %s19, 0
      %p58 = por %p56, %p57
      %s60 = sadd.s32 %s59, 1
      %p63 = scmp.eq.s32.totalorder %s13, 3
      %p64 = scmp.ne.s32.totalorder %s59, %s61
      %p65 = scmp.eq.s32.totalorder %s13, 0
      %p66 = por %p64, %p65
      %p67 = scmp.ne.s32.totalorder %s59, %s61
      %p68 = scmp.eq.s32.totalorder %s18, 3
      %p69 = por %p67, %p68
      %p70 = scmp.ne.s32.totalorder %s61, %s62
      %p71 = scmp.eq.s32.totalorder %s18, 0
      %p72 = por %p70, %p71
      %p73 = scmp.ne.s32.totalorder %s61, %s62
      %p74 = scmp.eq.s32.totalorder %s19, 3
      %p75 = por %p73, %p74
      %p77 = scmp.ne.s32.totalorder %s62, %s76
      %p78 = scmp.eq.s32.totalorder %s19, 0
      %p79 = por %p77, %p78
      %s80 = ssub.s32 %s20, %s32
      %p81 = scmp.eq.s32.totalorder %s80, 0
      %s83 = sadd.s32 %s82, 1
      %s84 = scalar_select %p81, %s82, %s83
      %p87 = pneg %p81
      %p88 = scmp.eq.s32.totalorder %s13, 3
      %p89 = por %p87, %p88
      %p90 = scmp.ne.s32.totalorder %s82, %s85
      %p91 = scmp.eq.s32.totalorder %s13, 0
      %p92 = por %p90, %p91
      %p93 = scmp.ne.s32.totalorder %s82, %s85
      %p94 = scmp.eq.s32.totalorder %s18, 3
      %p95 = por %p93, %p94
      %p96 = scmp.ne.s32.totalorder %s85, %s86
      %p97 = scmp.eq.s32.totalorder %s18, 0
      %p98 = por %p96, %p97
      %p99 = scmp.ne.s32.totalorder %s85, %s86
      %p100 = scmp.eq.s32.totalorder %s19, 3
      %p101 = por %p99, %p100
      %p103 = scmp.ne.s32.totalorder %s86, %s102
      %p104 = scmp.eq.s32.totalorder %s19, 0
      %p105 = por %p103, %p104
      %s107 = sadd.s32 %s106, 1
      %p110 = scmp.eq.s32.totalorder %s13, 3
      %p111 = scmp.ne.s32.totalorder %s106, %s108
      %p112 = scmp.eq.s32.totalorder %s13, 0
      %p113 = por %p111, %p112
      %p114 = scmp.ne.s32.totalorder %s106, %s108
      %p115 = scmp.eq.s32.totalorder %s18, 3
      %p116 = por %p114, %p115
      %p117 = scmp.ne.s32.totalorder %s108, %s109
      %p118 = scmp.eq.s32.totalorder %s18, 0
      %p119 = por %p117, %p118
      %p120 = scmp.ne.s32.totalorder %s108, %s109
      %p121 = scmp.eq.s32.totalorder %s19, 3
      %p122 = por %p120, %p121
      %p124 = scmp.ne.s32.totalorder %s109, %s123
      %p125 = scmp.eq.s32.totalorder %s19, 0
      %p126 = por %p124, %p125
      %s128 = sadd.s32 %s127, 1
      %p131 = scmp.eq.s32.totalorder %s13, 3
      %p132 = scmp.ne.s32.totalorder %s127, %s129
      %p133 = scmp.eq.s32.totalorder %s13, 0
      %p134 = por %p132, %p133
      %p135 = scmp.ne.s32.totalorder %s127, %s129
      %p136 = scmp.eq.s32.totalorder %s18, 3
      %p137 = por %p135, %p136
      %p138 = scmp.ne.s32.totalorder %s129, %s130
      %p139 = scmp.eq.s32.totalorder %s18, 0
      %p140 = por %p138, %p139
      %p141 = scmp.ne.s32.totalorder %s129, %s130
      %p142 = scmp.eq.s32.totalorder %s19, 3
      %p143 = por %p141, %p142
      %p145 = scmp.ne.s32.totalorder %s130, %s144
      %p146 = scmp.eq.s32.totalorder %s19, 0
      %p147 = por %p145, %p146
      %s148 = ssub.s32 %s20, %s32
      %p149 = scmp.eq.s32.totalorder %s148, 0
      %s151 = sadd.s32 %s150, 1
      %s152 = scalar_select %p149, %s150, %s151
      %p155 = pneg %p149
      %p156 = scmp.eq.s32.totalorder %s13, 3
      %p157 = por %p155, %p156
      %p158 = scmp.ne.s32.totalorder %s150, %s153
      %p159 = scmp.eq.s32.totalorder %s13, 0
      %p160 = por %p158, %p159
      %p161 = scmp.ne.s32.totalorder %s150, %s153
      %p162 = scmp.eq.s32.totalorder %s18, 3
      %p163 = por %p161, %p162
      %p164 = scmp.ne.s32.totalorder %s153, %s154
      %p165 = scmp.eq.s32.totalorder %s18, 0
      %p166 = por %p164, %p165
      %p167 = scmp.ne.s32.totalorder %s153, %s154
      %p168 = scmp.eq.s32.totalorder %s19, 3
      %p169 = por %p167, %p168
      %p171 = scmp.ne.s32.totalorder %s154, %s170
      %p172 = scmp.eq.s32.totalorder %s19, 0
      %p173 = por %p171, %p172
      %p174 = scmp.le.s32.totalorder 1, %s13
      %p175 = scmp.lt.s32.totalorder %s13, 5
      %p176 = pnand %p174, %p175
      %p177 = pneg %p176
      // Predicated region
      $region9: #{tpu_custom_call.1} parent=5 // pred_check
        _
      $region10: #{tpu_custom_call.1} parent=5 // pred_check_branch
        %179 = sbr.rel (%p176) target = $region12
      $region11: #{tpu_custom_call.1} parent=5 // pred_region
        %s180 = ssub.s32 %s13, 1
        // Predicated region
        $region13: #{tpu_custom_call.1} parent=11 // pred_check
          %p181 = pneg %p72
        $region14: #{tpu_custom_call.1} parent=11 // pred_check_branch
          %183 = sbr.rel (%p181) target = $region16
        $region15: #{tpu_custom_call.1} parent=11 // pred_region
          _
        $region16: #{tpu_custom_call.1} parent=11 // pred_fallthru
          _
        // Predicated region
        $region17: #{tpu_custom_call.1} parent=11 // pred_check
          %p184 = pneg %p98
        $region18: #{tpu_custom_call.1} parent=11 // pred_check_branch
          %186 = sbr.rel (%p184) target = $region20
        $region19: #{tpu_custom_call.1} parent=11 // pred_region
          %s187 = smul.u32 16, %s22
          %p188 = scmp.lt.s32.totalorder %s187, 15
          %s189 = scalar_select %p188, %s187, 15
          %s190 = smul.addr %s189, 8
          %s191 = scalar_lea.vmem %s2, %s190
          %s192 = smul.u32 16, %s22
        $region20: #{tpu_custom_call.1} parent=11 // pred_fallthru
          _
        // Predicated region
        $region21: #{tpu_custom_call.1} parent=11 // pred_check
          %p193 = pneg %p119
        $region22: #{tpu_custom_call.1} parent=11 // pred_check_branch
          %195 = sbr.rel (%p193) target = $region24
        $region23: #{tpu_custom_call.1} parent=11 // pred_region
          %197 = vsyncadd [#allocation5], 0
          %s198 = sshll.u32 %s3, 4
          %s199 = int_to_ptr.hbm [resolvable:$true] %s198
          %s200 = sshll.u32 [#allocation4], 4
          %s201 = int_to_ptr.vmem [resolvable:$true] %s200
          %206 = dma.hbm_to_vmem [thread:$0]  %s199, 2048, %s201, [#allocation5], 128, 128, 8
        $region24: #{tpu_custom_call.1} parent=11 // pred_fallthru
          _
        // Predicated region
        $region25: #{tpu_custom_call.1} parent=11 // pred_check
          %p207 = pneg %p140
        $region26: #{tpu_custom_call.1} parent=11 // pred_check_branch
          %209 = sbr.rel (%p207) target = $region28
        $region27: #{tpu_custom_call.1} parent=11 // pred_region
          _
        $region28: #{tpu_custom_call.1} parent=11 // pred_fallthru
          _
      $region12: #{tpu_custom_call.1} parent=5 // pred_fallthru
        _
      %p210 = scmp.lt.s32.totalorder %s13, 4
      // Predicated region
      $region29: #{tpu_custom_call.1} parent=5 // pred_check
        %p211 = pneg %p210
      $region30: #{tpu_custom_call.1} parent=5 // pred_check_branch
        %213 = sbr.rel (%p211) target = $region32
      $region31: #{tpu_custom_call.1} parent=5 // pred_region
        // Predicated region
        $region33: #{tpu_custom_call.1} parent=31 // pred_check
          %p214 = pneg %p45
        $region34: #{tpu_custom_call.1} parent=31 // pred_check_branch
          %216 = sbr.rel (%p214) target = $region36
        $region35: #{tpu_custom_call.1} parent=31 // pred_region
          %p217 = scmp.lt.s32.totalorder %s21, 3
          %s218 = scalar_select %p217, %s21, 3
          %s219 = smul.addr %s218, 8
          %s220 = scalar_lea.vmem %s0, %s219
        $region36: #{tpu_custom_call.1} parent=31 // pred_fallthru
          _
      $region32: #{tpu_custom_call.1} parent=5 // pred_fallthru
        _
      %p221 = scmp.le.s32.totalorder 1, %s13
      %p222 = scmp.lt.s32.totalorder %s13, 5
      %p223 = pnand %p221, %p222
      %p224 = pneg %p223
      // Predicated region
      $region37: #{tpu_custom_call.1} parent=5 // pred_check
        _
      $region38: #{tpu_custom_call.1} parent=5 // pred_check_branch
        %226 = sbr.rel (%p223) target = $region40
      $region39: #{tpu_custom_call.1} parent=5 // pred_region
        %s227 = ssub.s32 %s13, 1
        // Predicated region
        $region41: #{tpu_custom_call.1} parent=39 // pred_check
          %p228 = pneg %p119
        $region42: #{tpu_custom_call.1} parent=39 // pred_check_branch
          %230 = sbr.rel (%p228) target = $region44
        $region43: #{tpu_custom_call.1} parent=39 // pred_region
          %232 = dma.done [#allocation5], 2048
        $region44: #{tpu_custom_call.1} parent=39 // pred_fallthru
          _
        %p233 = scmp.lt.s32.totalorder %s23, 3
        %s234 = scalar_select %p233, %s23, 3
        %s235 = smul.addr %s234, 8
        %s236 = scalar_lea.vmem %s0, %s235
        %p237 = pneg %p51
        %p238 = pneg %p48
        %p239 = pneg %p72
        %p240 = pneg %p69
        %s241 = smul.u32 16, %s22
        %p242 = scmp.lt.s32.totalorder %s241, 15
        %s243 = scalar_select %p242, %s241, 15
        %s244 = smul.addr %s243, 8
        %s245 = scalar_lea.vmem %s2, %s244
        %p246 = pneg %p98
        %p247 = pneg %p95
        %p248 = pneg %p119
        %p249 = pneg %p116
        %p250 = pneg %p140
        %p251 = pneg %p137
        %p252 = pneg %p166
        %p253 = pneg %p163
        %p254 = scmp.lt.s32.totalorder %s23, 3
        %s255 = scalar_select %p254, %s23, 3
        %s256 = smul.addr %s255, 8
        %s257 = scalar_lea.vmem %s0, %s256
        %s258 = smul.u32 16, %s22
        %p259 = scmp.lt.s32.totalorder %s258, 15
        %s260 = scalar_select %p259, %s258, 15
        %s261 = smul.addr %s260, 8
        %s262 = scalar_lea.vmem %s2, %s261
        %s263 = smul.u32 16, %s22
        %s264 = smul.u32 16, %s22
        %p265 = scmp.eq.s32.totalorder %s23, 0
        // Predicated region
        $region45: #{tpu_custom_call.1} parent=39 // pred_check
          %p266 = pneg %p265
        $region46: #{tpu_custom_call.1} parent=39 // pred_check_branch
          %268 = sbr.rel (%p266) target = $region48
        $region47: #{tpu_custom_call.1} parent=39 // pred_region
          %v269 = vlaneseq
          %v270 = vand.u32 %v269, 127
          %271 = vst [vmem:[#allocation3] sm:$0x1] %v270
          %272 = vst [vmem:[#allocation2] sm:$0xff] 0.0
          %273 = vst [vmem:[#allocation2 + $0x8] sm:$0xff] 0.0
          %274 = vst [vmem:[#allocation2 + $0x10] sm:$0xff] 0.0
          %275 = vst [vmem:[#allocation2 + $0x18] sm:$0xff] 0.0
          %276 = vst [vmem:[#allocation2 + $0x20] sm:$0xff] 0.0
          %277 = vst [vmem:[#allocation2 + $0x28] sm:$0xff] 0.0
          %278 = vst [vmem:[#allocation2 + $0x30] sm:$0xff] 0.0
          %279 = vst [vmem:[#allocation2 + $0x38] sm:$0xff] 0.0
          %280 = vst [vmem:[#allocation2 + $0x40] sm:$0xff] 0.0
          %281 = vst [vmem:[#allocation2 + $0x48] sm:$0xff] 0.0
          %282 = vst [vmem:[#allocation2 + $0x50] sm:$0xff] 0.0
          %283 = vst [vmem:[#allocation2 + $0x58] sm:$0xff] 0.0
          %284 = vst [vmem:[#allocation2 + $0x60] sm:$0xff] 0.0
          %285 = vst [vmem:[#allocation2 + $0x68] sm:$0xff] 0.0
          %286 = vst [vmem:[#allocation2 + $0x70] sm:$0xff] 0.0
          %287 = vst [vmem:[#allocation2 + $0x78] sm:$0xff] 0.0
        $region48: #{tpu_custom_call.1} parent=39 // pred_fallthru
          _
        %v288 = vld [vmem:[%s257] sm:$0xff]
        %v289 = vld [vmem:[#allocation3] sm:$0x1]
        %290 = vset.pattern.permute.xlu0 0
        %291 = vperm.xlu0 %290, %v288
        %v292 = vpop.permute.xlu0 %291
        %v293 = vperm.slane %v289, 0
        %vm294 = vcmp.eq.s32.totalorder %v292, %v293
        %v295 = vsel %vm294, 1, 0
        %v296 = vcvt.s32.f32 %v295
        %s297 = smul.u32 %s22, 128
        %v298 = vstv %s297
        %v299 = vsub.s32 %v288, %v298
        %300 = vset.pattern.permute.xlu0 1
        %301 = vperm.xlu0 %300, %v299
        %v302 = vpop.permute.xlu0 %301
        %vm303 = vcmp.eq.s32.totalorder %v302, %v293
        %v304 = vsel %vm303, 1, 0
        %v305 = vcvt.s32.f32 %v304
        %v306 = vld [vmem:[%s1] sm:$0xff]
        %v307 = vld [vmem:[%s1 + $0x8] sm:$0xff]
        %v308 = vld [vmem:[%s1 + $0x10] sm:$0xff]
        %v309 = vld [vmem:[%s1 + $0x18] sm:$0xff]
        %v310 = vld [vmem:[%s1 + $0x20] sm:$0xff]
        %v311 = vld [vmem:[%s1 + $0x28] sm:$0xff]
        %v312 = vld [vmem:[%s1 + $0x30] sm:$0xff]
        %v313 = vld [vmem:[%s1 + $0x38] sm:$0xff]
        %v314 = vld [vmem:[%s1 + $0x40] sm:$0xff]
        %v315 = vld [vmem:[%s1 + $0x48] sm:$0xff]
        %v316 = vld [vmem:[%s1 + $0x50] sm:$0xff]
        %v317 = vld [vmem:[%s1 + $0x58] sm:$0xff]
        %v318 = vld [vmem:[%s1 + $0x60] sm:$0xff]
        %v319 = vld [vmem:[%s1 + $0x68] sm:$0xff]
        %v320 = vld [vmem:[%s1 + $0x70] sm:$0xff]
        %v321 = vld [vmem:[%s1 + $0x78] sm:$0xff]
        %322 = vmatpush.msra.mxu0 %v321
        %323 = vmatpush.msra.mxu0 %v320
        %324 = vmatpush.msra.mxu0 %v319
        %325 = vmatpush.msra.mxu0 %v318
        %326 = vmatpush.msra.mxu0 %v317
        %327 = vmatpush.msra.mxu0 %v316
        %328 = vmatpush.msra.mxu0 %v315
        %329 = vmatpush.msra.mxu0 %v314
        %330 = vmatpush.msra.mxu0 %v313
        %331 = vmatpush.msra.mxu0 %v312
        %332 = vmatpush.msra.mxu0 %v311
        %333 = vmatpush.msra.mxu0 %v310
        %334 = vmatpush.msra.mxu0 %v309
        %335 = vmatpush.msra.mxu0 %v308
        %336 = vmatpush.msra.mxu0 %v307
        %337 = vmatpush.msra.mxu0 %v306
        %338 = vmatmul.f32.gmra.mxu0 %v296
        %v339 = vpop.f32.mrf.mxu0
        %v340 = vadd.f32 0.0, %v339
        %341 = vdwg.mxu0
        %342 = vset.pattern.permute.xlu0 2
        %343 = vperm.xlu0 %342, %v288
        %v344 = vpop.permute.xlu0 %343
        %v346 = vmul.f32 %v340, %v344
        %v347 = vld [vmem:[#allocation2] sm:$0xff]
        %v348 = vld [vmem:[#allocation2 + $0x8] sm:$0xff]
        %v349 = vld [vmem:[#allocation2 + $0x10] sm:$0xff]
        %v350 = vld [vmem:[#allocation2 + $0x18] sm:$0xff]
        %v351 = vld [vmem:[#allocation2 + $0x20] sm:$0xff]
        %v352 = vld [vmem:[#allocation2 + $0x28] sm:$0xff]
        %v353 = vld [vmem:[#allocation2 + $0x30] sm:$0xff]
        %v354 = vld [vmem:[#allocation2 + $0x38] sm:$0xff]
        %v355 = vld [vmem:[#allocation2 + $0x40] sm:$0xff]
        %v356 = vld [vmem:[#allocation2 + $0x48] sm:$0xff]
        %v357 = vld [vmem:[#allocation2 + $0x50] sm:$0xff]
        %v358 = vld [vmem:[#allocation2 + $0x58] sm:$0xff]
        %v359 = vld [vmem:[#allocation2 + $0x60] sm:$0xff]
        %v360 = vld [vmem:[#allocation2 + $0x68] sm:$0xff]
        %v361 = vld [vmem:[#allocation2 + $0x70] sm:$0xff]
        %v362 = vld [vmem:[#allocation2 + $0x78] sm:$0xff]
        %363 = vxpose.xlu0.b32.start [1/16] %v305, 128
        %364 = vxpose.xlu0.b32.cont [2/16] 0.0, 128
        %365 = vxpose.xlu0.b32.cont [3/16] 0.0, 128
        %366 = vxpose.xlu0.b32.cont [4/16] 0.0, 128
        %367 = vxpose.xlu0.b32.cont [5/16] 0.0, 128
        %368 = vxpose.xlu0.b32.cont [6/16] 0.0, 128
        %369 = vxpose.xlu0.b32.cont [7/16] 0.0, 128
        %370 = vxpose.xlu0.b32.cont [8/16] 0.0, 128
        %371 = vxpose.xlu0.b32.cont [9/16] 0.0, 128
        %372 = vxpose.xlu0.b32.cont [10/16] 0.0, 128
        %373 = vxpose.xlu0.b32.cont [11/16] 0.0, 128
        %374 = vxpose.xlu0.b32.cont [12/16] 0.0, 128
        %375 = vxpose.xlu0.b32.cont [13/16] 0.0, 128
        %376 = vxpose.xlu0.b32.cont [14/16] 0.0, 128
        %377 = vxpose.xlu0.b32.cont [15/16] 0.0, 128
        %378 = vxpose.xlu0.b32.end [16/16] 0.0, 128
        %v379 = vpop.trf.xlu0
        %v380 = vpop.trf.xlu0
        %v381 = vpop.trf.xlu0
        %v382 = vpop.trf.xlu0
        %v383 = vpop.trf.xlu0
        %v384 = vpop.trf.xlu0
        %v385 = vpop.trf.xlu0
        %v386 = vpop.trf.xlu0
        %v387 = vpop.trf.xlu0
        %v388 = vpop.trf.xlu0
        %v389 = vpop.trf.xlu0
        %v390 = vpop.trf.xlu0
        %v391 = vpop.trf.xlu0
        %v392 = vpop.trf.xlu0
        %v393 = vpop.trf.xlu0
        %v394 = vpop.trf.xlu0
        %vm395 = vcmask 64512
        %v397 = vsel %vm395, %v379, 0
        %v400 = vsel %vm395, %v380, 0
        %v403 = vsel %vm395, %v381, 0
        %v406 = vsel %vm395, %v382, 0
        %v409 = vsel %vm395, %v383, 0
        %v412 = vsel %vm395, %v384, 0
        %v415 = vsel %vm395, %v385, 0
        %v418 = vsel %vm395, %v386, 0
        %v421 = vsel %vm395, %v387, 0
        %v424 = vsel %vm395, %v388, 0
        %v427 = vsel %vm395, %v389, 0
        %v430 = vsel %vm395, %v390, 0
        %v433 = vsel %vm395, %v391, 0
        %v436 = vsel %vm395, %v392, 0
        %v439 = vsel %vm395, %v393, 0
        %v442 = vsel %vm395, %v394, 0
        %444 = vmatpush.msra.mxu0 0.0
        %445 = vmatpush.msra.mxu0 0.0
        %446 = vmatpush.msra.mxu0 0.0
        %447 = vmatpush.msra.mxu0 0.0
        %448 = vmatpush.msra.mxu0 0.0
        %449 = vmatpush.msra.mxu0 0.0
        %450 = vmatpush.msra.mxu0 0.0
        %451 = vmatpush.msra.mxu0 0.0
        %452 = vmatpush.msra.mxu0 0.0
        %453 = vmatpush.msra.mxu0 0.0
        %454 = vmatpush.msra.mxu0 0.0
        %455 = vmatpush.msra.mxu0 0.0
        %456 = vmatpush.msra.mxu0 0.0
        %457 = vmatpush.msra.mxu0 0.0
        %458 = vmatpush.msra.mxu0 0.0
        %459 = vmatpush.msra.mxu0 %v346
        %460 = vmatmul.f32.gmra.mxu0 %v397
        %v461 = vpop.f32.mrf.mxu0
        %v462 = vadd.f32 0.0, %v461
        %463 = vmatmul.f32.gmra.mxu0 %v400
        %v464 = vpop.f32.mrf.mxu0
        %v465 = vadd.f32 0.0, %v464
        %466 = vmatmul.f32.gmra.mxu0 %v403
        %v467 = vpop.f32.mrf.mxu0
        %v468 = vadd.f32 0.0, %v467
        %469 = vmatmul.f32.gmra.mxu0 %v406
        %v470 = vpop.f32.mrf.mxu0
        %v471 = vadd.f32 0.0, %v470
        %472 = vmatmul.f32.gmra.mxu0 %v409
        %v473 = vpop.f32.mrf.mxu0
        %v474 = vadd.f32 0.0, %v473
        %475 = vmatmul.f32.gmra.mxu0 %v412
        %v476 = vpop.f32.mrf.mxu0
        %v477 = vadd.f32 0.0, %v476
        %478 = vmatmul.f32.gmra.mxu0 %v415
        %v479 = vpop.f32.mrf.mxu0
        %v480 = vadd.f32 0.0, %v479
        %481 = vmatmul.f32.gmra.mxu0 %v418
        %v482 = vpop.f32.mrf.mxu0
        %v483 = vadd.f32 0.0, %v482
        %484 = vmatmul.f32.gmra.mxu0 %v421
        %v485 = vpop.f32.mrf.mxu0
        %v486 = vadd.f32 0.0, %v485
        %487 = vmatmul.f32.gmra.mxu0 %v424
        %v488 = vpop.f32.mrf.mxu0
        %v489 = vadd.f32 0.0, %v488
        %490 = vmatmul.f32.gmra.mxu0 %v427
        %v491 = vpop.f32.mrf.mxu0
        %v492 = vadd.f32 0.0, %v491
        %493 = vmatmul.f32.gmra.mxu0 %v430
        %v494 = vpop.f32.mrf.mxu0
        %v495 = vadd.f32 0.0, %v494
        %496 = vmatmul.f32.gmra.mxu0 %v433
        %v497 = vpop.f32.mrf.mxu0
        %v498 = vadd.f32 0.0, %v497
        %499 = vmatmul.f32.gmra.mxu0 %v436
        %v500 = vpop.f32.mrf.mxu0
        %v501 = vadd.f32 0.0, %v500
        %502 = vmatmul.f32.gmra.mxu0 %v439
        %v503 = vpop.f32.mrf.mxu0
        %v504 = vadd.f32 0.0, %v503
        %505 = vmatmul.f32.gmra.mxu0 %v442
        %v506 = vpop.f32.mrf.mxu0
        %v507 = vadd.f32 0.0, %v506
        %508 = vdwg.mxu0
        %v509 = vadd.f32 %v347, %v462
        %v510 = vadd.f32 %v348, %v465
        %v511 = vadd.f32 %v349, %v468
        %v512 = vadd.f32 %v350, %v471
        %v513 = vadd.f32 %v351, %v474
        %v514 = vadd.f32 %v352, %v477
        %v515 = vadd.f32 %v353, %v480
        %v516 = vadd.f32 %v354, %v483
        %v517 = vadd.f32 %v355, %v486
        %v518 = vadd.f32 %v356, %v489
        %v519 = vadd.f32 %v357, %v492
        %v520 = vadd.f32 %v358, %v495
        %v521 = vadd.f32 %v359, %v498
        %v522 = vadd.f32 %v360, %v501
        %v523 = vadd.f32 %v361, %v504
        %v524 = vadd.f32 %v362, %v507
        %525 = vst [vmem:[#allocation2] sm:$0xff] %v509
        %526 = vst [vmem:[#allocation2 + $0x8] sm:$0xff] %v510
        %527 = vst [vmem:[#allocation2 + $0x10] sm:$0xff] %v511
        %528 = vst [vmem:[#allocation2 + $0x18] sm:$0xff] %v512
        %529 = vst [vmem:[#allocation2 + $0x20] sm:$0xff] %v513
        %530 = vst [vmem:[#allocation2 + $0x28] sm:$0xff] %v514
        %531 = vst [vmem:[#allocation2 + $0x30] sm:$0xff] %v515
        %532 = vst [vmem:[#allocation2 + $0x38] sm:$0xff] %v516
        %533 = vst [vmem:[#allocation2 + $0x40] sm:$0xff] %v517
        %534 = vst [vmem:[#allocation2 + $0x48] sm:$0xff] %v518
        %535 = vst [vmem:[#allocation2 + $0x50] sm:$0xff] %v519
        %536 = vst [vmem:[#allocation2 + $0x58] sm:$0xff] %v520
        %537 = vst [vmem:[#allocation2 + $0x60] sm:$0xff] %v521
        %538 = vst [vmem:[#allocation2 + $0x68] sm:$0xff] %v522
        %539 = vst [vmem:[#allocation2 + $0x70] sm:$0xff] %v523
        %540 = vst [vmem:[#allocation2 + $0x78] sm:$0xff] %v524
        %p541 = scmp.eq.s32.totalorder %s23, 3
        // Predicated region
        $region49: #{tpu_custom_call.1} parent=39 // pred_check
          %p542 = pneg %p541
        $region50: #{tpu_custom_call.1} parent=39 // pred_check_branch
          %544 = sbr.rel (%p542) target = $region52
        $region51: #{tpu_custom_call.1} parent=39 // pred_region
          %v545 = vld [vmem:[#allocation2] sm:$0xff]
          %v546 = vld [vmem:[#allocation2 + $0x8] sm:$0xff]
          %v547 = vld [vmem:[#allocation2 + $0x10] sm:$0xff]
          %v548 = vld [vmem:[#allocation2 + $0x18] sm:$0xff]
          %v549 = vld [vmem:[#allocation2 + $0x20] sm:$0xff]
          %v550 = vld [vmem:[#allocation2 + $0x28] sm:$0xff]
          %v551 = vld [vmem:[#allocation2 + $0x30] sm:$0xff]
          %v552 = vld [vmem:[#allocation2 + $0x38] sm:$0xff]
          %v553 = vld [vmem:[#allocation2 + $0x40] sm:$0xff]
          %v554 = vld [vmem:[#allocation2 + $0x48] sm:$0xff]
          %v555 = vld [vmem:[#allocation2 + $0x50] sm:$0xff]
          %v556 = vld [vmem:[#allocation2 + $0x58] sm:$0xff]
          %v557 = vld [vmem:[#allocation2 + $0x60] sm:$0xff]
          %v558 = vld [vmem:[#allocation2 + $0x68] sm:$0xff]
          %v559 = vld [vmem:[#allocation2 + $0x70] sm:$0xff]
          %v560 = vld [vmem:[#allocation2 + $0x78] sm:$0xff]
          %v561 = vld [vmem:[%s262] sm:$0xff]
          %v562 = vld [vmem:[%s262 + $0x8] sm:$0xff]
          %v563 = vld [vmem:[%s262 + $0x10] sm:$0xff]
          %v564 = vld [vmem:[%s262 + $0x18] sm:$0xff]
          %v565 = vld [vmem:[%s262 + $0x20] sm:$0xff]
          %v566 = vld [vmem:[%s262 + $0x28] sm:$0xff]
          %v567 = vld [vmem:[%s262 + $0x30] sm:$0xff]
          %v568 = vld [vmem:[%s262 + $0x38] sm:$0xff]
          %v569 = vld [vmem:[%s262 + $0x40] sm:$0xff]
          %v570 = vld [vmem:[%s262 + $0x48] sm:$0xff]
          %v571 = vld [vmem:[%s262 + $0x50] sm:$0xff]
          %v572 = vld [vmem:[%s262 + $0x58] sm:$0xff]
          %v573 = vld [vmem:[%s262 + $0x60] sm:$0xff]
          %v574 = vld [vmem:[%s262 + $0x68] sm:$0xff]
          %v575 = vld [vmem:[%s262 + $0x70] sm:$0xff]
          %v576 = vld [vmem:[%s262 + $0x78] sm:$0xff]
          %578 = vset.pattern.permute.xlu0 0
          %579 = vperm.xlu0 %578, %v561
          %v580 = vpop.permute.xlu0 %579
          %583 = vset.pattern.permute.xlu0 0
          %584 = vperm.xlu0 %583, %v562
          %v585 = vpop.permute.xlu0 %584
          %588 = vset.pattern.permute.xlu0 0
          %589 = vperm.xlu0 %588, %v563
          %v590 = vpop.permute.xlu0 %589
          %593 = vset.pattern.permute.xlu0 0
          %594 = vperm.xlu0 %593, %v564
          %v595 = vpop.permute.xlu0 %594
          %598 = vset.pattern.permute.xlu0 0
          %599 = vperm.xlu0 %598, %v565
          %v600 = vpop.permute.xlu0 %599
          %603 = vset.pattern.permute.xlu0 0
          %604 = vperm.xlu0 %603, %v566
          %v605 = vpop.permute.xlu0 %604
          %608 = vset.pattern.permute.xlu0 0
          %609 = vperm.xlu0 %608, %v567
          %v610 = vpop.permute.xlu0 %609
          %613 = vset.pattern.permute.xlu0 0
          %614 = vperm.xlu0 %613, %v568
          %v615 = vpop.permute.xlu0 %614
          %618 = vset.pattern.permute.xlu0 0
          %619 = vperm.xlu0 %618, %v569
          %v620 = vpop.permute.xlu0 %619
          %623 = vset.pattern.permute.xlu0 0
          %624 = vperm.xlu0 %623, %v570
          %v625 = vpop.permute.xlu0 %624
          %628 = vset.pattern.permute.xlu0 0
          %629 = vperm.xlu0 %628, %v571
          %v630 = vpop.permute.xlu0 %629
          %633 = vset.pattern.permute.xlu0 0
          %634 = vperm.xlu0 %633, %v572
          %v635 = vpop.permute.xlu0 %634
          %638 = vset.pattern.permute.xlu0 0
          %639 = vperm.xlu0 %638, %v573
          %v640 = vpop.permute.xlu0 %639
          %643 = vset.pattern.permute.xlu0 0
          %644 = vperm.xlu0 %643, %v574
          %v645 = vpop.permute.xlu0 %644
          %648 = vset.pattern.permute.xlu0 0
          %649 = vperm.xlu0 %648, %v575
          %v650 = vpop.permute.xlu0 %649
          %653 = vset.pattern.permute.xlu0 0
          %654 = vperm.xlu0 %653, %v576
          %v655 = vpop.permute.xlu0 %654
          %v657 = vmul.f32 %v545, %v580
          %v658 = vmul.f32 %v546, %v585
          %v659 = vmul.f32 %v547, %v590
          %v660 = vmul.f32 %v548, %v595
          %v661 = vmul.f32 %v549, %v600
          %v662 = vmul.f32 %v550, %v605
          %v663 = vmul.f32 %v551, %v610
          %v664 = vmul.f32 %v552, %v615
          %v665 = vmul.f32 %v553, %v620
          %v666 = vmul.f32 %v554, %v625
          %v667 = vmul.f32 %v555, %v630
          %v668 = vmul.f32 %v556, %v635
          %v669 = vmul.f32 %v557, %v640
          %v670 = vmul.f32 %v558, %v645
          %v671 = vmul.f32 %v559, %v650
          %v672 = vmul.f32 %v560, %v655
          %v673 = vld [vmem:[#allocation4] sm:$0xff]
          %v674 = vld [vmem:[#allocation4 + $0x8] sm:$0xff]
          %v675 = vld [vmem:[#allocation4 + $0x10] sm:$0xff]
          %v676 = vld [vmem:[#allocation4 + $0x18] sm:$0xff]
          %v677 = vld [vmem:[#allocation4 + $0x20] sm:$0xff]
          %v678 = vld [vmem:[#allocation4 + $0x28] sm:$0xff]
          %v679 = vld [vmem:[#allocation4 + $0x30] sm:$0xff]
          %v680 = vld [vmem:[#allocation4 + $0x38] sm:$0xff]
          %v681 = vld [vmem:[#allocation4 + $0x40] sm:$0xff]
          %v682 = vld [vmem:[#allocation4 + $0x48] sm:$0xff]
          %v683 = vld [vmem:[#allocation4 + $0x50] sm:$0xff]
          %v684 = vld [vmem:[#allocation4 + $0x58] sm:$0xff]
          %v685 = vld [vmem:[#allocation4 + $0x60] sm:$0xff]
          %v686 = vld [vmem:[#allocation4 + $0x68] sm:$0xff]
          %v687 = vld [vmem:[#allocation4 + $0x70] sm:$0xff]
          %v688 = vld [vmem:[#allocation4 + $0x78] sm:$0xff]
          %v689 = vld [vmem:[%s4] sm:$0x1]
          %v691 = vperm.slane %v689, 0
          %693 = vmatpush.xpose.msra.mxu0 %v688
          %694 = vmatpush.xpose.msra.mxu0 %v687
          %695 = vmatpush.xpose.msra.mxu0 %v686
          %696 = vmatpush.xpose.msra.mxu0 %v685
          %697 = vmatpush.xpose.msra.mxu0 %v684
          %698 = vmatpush.xpose.msra.mxu0 %v683
          %699 = vmatpush.xpose.msra.mxu0 %v682
          %700 = vmatpush.xpose.msra.mxu0 %v681
          %701 = vmatpush.xpose.msra.mxu0 %v680
          %702 = vmatpush.xpose.msra.mxu0 %v679
          %703 = vmatpush.xpose.msra.mxu0 %v678
          %704 = vmatpush.xpose.msra.mxu0 %v677
          %705 = vmatpush.xpose.msra.mxu0 %v676
          %706 = vmatpush.xpose.msra.mxu0 %v675
          %707 = vmatpush.xpose.msra.mxu0 %v674
          %708 = vmatpush.xpose.msra.mxu0 %v673
          %709 = vmatmul.f32.gmra.mxu0 %v657
          %v710 = vpop.f32.mrf.mxu0
          %v711 = vadd.f32 %v691, %v710
          %712 = vmatmul.f32.gmra.mxu0 %v658
          %v713 = vpop.f32.mrf.mxu0
          %v714 = vadd.f32 %v691, %v713
          %715 = vmatmul.f32.gmra.mxu0 %v659
          %v716 = vpop.f32.mrf.mxu0
          %v717 = vadd.f32 %v691, %v716
          %718 = vmatmul.f32.gmra.mxu0 %v660
          %v719 = vpop.f32.mrf.mxu0
          %v720 = vadd.f32 %v691, %v719
          %721 = vmatmul.f32.gmra.mxu0 %v661
          %v722 = vpop.f32.mrf.mxu0
          %v723 = vadd.f32 %v691, %v722
          %724 = vmatmul.f32.gmra.mxu0 %v662
          %v725 = vpop.f32.mrf.mxu0
          %v726 = vadd.f32 %v691, %v725
          %727 = vmatmul.f32.gmra.mxu0 %v663
          %v728 = vpop.f32.mrf.mxu0
          %v729 = vadd.f32 %v691, %v728
          %730 = vmatmul.f32.gmra.mxu0 %v664
          %v731 = vpop.f32.mrf.mxu0
          %v732 = vadd.f32 %v691, %v731
          %733 = vmatmul.f32.gmra.mxu0 %v665
          %v734 = vpop.f32.mrf.mxu0
          %v735 = vadd.f32 %v691, %v734
          %736 = vmatmul.f32.gmra.mxu0 %v666
          %v737 = vpop.f32.mrf.mxu0
          %v738 = vadd.f32 %v691, %v737
          %739 = vmatmul.f32.gmra.mxu0 %v667
          %v740 = vpop.f32.mrf.mxu0
          %v741 = vadd.f32 %v691, %v740
          %742 = vmatmul.f32.gmra.mxu0 %v668
          %v743 = vpop.f32.mrf.mxu0
          %v744 = vadd.f32 %v691, %v743
          %745 = vmatmul.f32.gmra.mxu0 %v669
          %v746 = vpop.f32.mrf.mxu0
          %v747 = vadd.f32 %v691, %v746
          %748 = vmatmul.f32.gmra.mxu0 %v670
          %v749 = vpop.f32.mrf.mxu0
          %v750 = vadd.f32 %v691, %v749
          %751 = vmatmul.f32.gmra.mxu0 %v671
          %v752 = vpop.f32.mrf.mxu0
          %v753 = vadd.f32 %v691, %v752
          %754 = vmatmul.f32.gmra.mxu0 %v672
          %v755 = vpop.f32.mrf.mxu0
          %v756 = vadd.f32 %v691, %v755
          %757 = vdwg.mxu0
          %758 = vst [vmem:[#allocation7] sm:$0xff] %v711
          %759 = vst [vmem:[#allocation7 + $0x8] sm:$0xff] %v714
          %760 = vst [vmem:[#allocation7 + $0x10] sm:$0xff] %v717
          %761 = vst [vmem:[#allocation7 + $0x18] sm:$0xff] %v720
          %762 = vst [vmem:[#allocation7 + $0x20] sm:$0xff] %v723
          %763 = vst [vmem:[#allocation7 + $0x28] sm:$0xff] %v726
          %764 = vst [vmem:[#allocation7 + $0x30] sm:$0xff] %v729
          %765 = vst [vmem:[#allocation7 + $0x38] sm:$0xff] %v732
          %766 = vst [vmem:[#allocation7 + $0x40] sm:$0xff] %v735
          %767 = vst [vmem:[#allocation7 + $0x48] sm:$0xff] %v738
          %768 = vst [vmem:[#allocation7 + $0x50] sm:$0xff] %v741
          %769 = vst [vmem:[#allocation7 + $0x58] sm:$0xff] %v744
          %770 = vst [vmem:[#allocation7 + $0x60] sm:$0xff] %v747
          %771 = vst [vmem:[#allocation7 + $0x68] sm:$0xff] %v750
          %772 = vst [vmem:[#allocation7 + $0x70] sm:$0xff] %v753
          %773 = vst [vmem:[#allocation7 + $0x78] sm:$0xff] %v756
        $region52: #{tpu_custom_call.1} parent=39 // pred_fallthru
          _
        // Predicated region
        $region53: #{tpu_custom_call.1} parent=39 // pred_check
          %p774 = pneg %p163
        $region54: #{tpu_custom_call.1} parent=39 // pred_check_branch
          %776 = sbr.rel (%p774) target = $region56
        $region55: #{tpu_custom_call.1} parent=39 // pred_region
          %s777 = smul.u32 16, %s22
          %779 = vsyncadd [#allocation6], 0
          %s780 = smul.addr %s777, 8
          %s781 = scalar_lea.hbm %s5, %s780
          %s782 = sshll.u32 [#allocation7], 4
          %s783 = int_to_ptr.vmem [resolvable:$true] %s782
          %s784 = sshll.u32 %s781, 4
          %s785 = int_to_ptr.hbm [resolvable:$true] %s784
          %790 = dma.vmem_to_hbm [thread:$0]  %s783, 2048, %s785, [#allocation6], 128, 128, 8
        $region56: #{tpu_custom_call.1} parent=39 // pred_fallthru
          _
        // Predicated region
        $region57: #{tpu_custom_call.1} parent=39 // pred_check
          %p791 = pneg %p163
        $region58: #{tpu_custom_call.1} parent=39 // pred_check_branch
          %793 = sbr.rel (%p791) target = $region60
        $region59: #{tpu_custom_call.1} parent=39 // pred_region
          %795 = dma.done [#allocation6], 2048
        $region60: #{tpu_custom_call.1} parent=39 // pred_fallthru
          _
      $region40: #{tpu_custom_call.1} parent=5 // pred_fallthru
        _
      %p796 = scmp.le.s32.totalorder 2, %s13
      // Predicated region
      $region61: #{tpu_custom_call.1} parent=5 // pred_check
        %p797 = pneg %p796
      $region62: #{tpu_custom_call.1} parent=5 // pred_check_branch
        %799 = sbr.rel (%p797) target = $region64
      $region63: #{tpu_custom_call.1} parent=5 // pred_region
        %s800 = ssub.s32 %s13, 2
      $region64: #{tpu_custom_call.1} parent=5 // pred_fallthru
        _
    $region6: #{tpu_custom_call.1} parent=1 // loop_footer
      %s17 = sadd.s32 1, %s13
    $region7: #{tpu_custom_call.1} parent=1 // loop_footer_branch
      %12 = sbr.rel target = $region3
    $region8: #{tpu_custom_call.1} parent=1 // loop_exit
      _
    %801 = vsyncpa [#allocation5], 1
    %s802 = scalar_lea.sflag [#allocation5], 1
    %803 = vsyncpa %s802, 1
    %804 = vsyncpa [#allocation6], 1
    %s805 = scalar_lea.sflag [#allocation6], 1
    %806 = vsyncpa %s805, 1

</llo_original>
